<compile_context>
chip_gen: v5e
topology: v5e:2x2
jax: 0.10.0
libtpu: 0.0.40
codegen_flags: <defaults>
</compile_context>

<pallas_src>
import functools
from typing import NamedTuple

import numpy as np

import jax
import jax.numpy as jnp
from jax.experimental import pallas as pl
from jax.experimental.pallas import tpu as pltpu


def _round_up(x, m):
    return ((x + m - 1) // m) * m


def _choose_tiles(n, tm_req, tk_req):
    """Static tile sizes: tk divides nc (= round_up(n, 128)), tm divides nr,
    and the row grid keeps >= 2 tiles when possible (v7x has 2 TensorCores)."""
    nc = _round_up(n, 128)
    k_units = nc // 128
    tk_units = max(1, min(tk_req // 128, k_units))
    while k_units % tk_units:
        tk_units -= 1
    tk = tk_units * 128

    nr = _round_up(n, 16)
    r_units = nr // 16
    tm_units = max(1, min(tm_req // 16, r_units))
    if r_units >= 2:
        tm_units = max(1, min(tm_units, r_units // 2))
    while r_units % tm_units:
        tm_units -= 1
    tm = tm_units * 16
    return tm, tk, nr, nc


class PreparedAdjacency(NamedTuple):
    adj: jax.Array      # (nr, nc) bf16, zero-padded dense adjacency
    col_ids: jax.Array  # (nr//tm, kmax) int32 -- nonzero column-tile ids per row tile
    cnt: jax.Array      # (nr//tm,) int32      -- number of nonzero column tiles
    n: int
    tm: int
    tk: int


def prepare_adjacency(adj, *, tm=512, tk=1024):
    """One-time prep (call OUTSIDE the per-step forward): pad + cast the N x N
    adjacency to bf16 and extract its (tm, tk) block-sparsity structure."""
    n = adj.shape[0]
    assert adj.shape == (n, n)
    tm, tk, nr, nc = _choose_tiles(n, tm, tk)
    adj_p = jnp.pad(jnp.asarray(adj), ((0, nr - n), (0, nc - n))).astype(jnp.bfloat16)

    nri, nki = nr // tm, nc // tk
    # Tiny (nri, nki) bool block-occupancy map; reduction on device, pack on host.
    blk = np.asarray(jnp.any(adj_p.reshape(nri, tm, nki, tk) != 0, axis=(1, 3)))
    cnt = blk.sum(axis=1).astype(np.int32)
    kmax = max(int(cnt.max()) if cnt.size else 0, 1)
    col_ids = np.zeros((nri, kmax), dtype=np.int32)
    for i in range(nri):
        nz = np.flatnonzero(blk[i])
        if nz.size:
            col_ids[i, : nz.size] = nz
            col_ids[i, nz.size:] = nz[-1]   # repeat last id -> pipeline dedups the DMA
    return PreparedAdjacency(adj_p, jnp.asarray(col_ids), jnp.asarray(cnt), n, tm, tk)


# --------------------------- stage 1: seq @ W^T ----------------------------- #
def _fc_kernel(h_ref, wt_ref, fts_ref):
    # h_ref: (tk, din) bf16 ; wt_ref: (din, dp) bf16 ; fts_ref: (tk, dp) bf16
    fts_ref[...] = jnp.dot(
        h_ref[...], wt_ref[...], preferred_element_type=jnp.float32
    ).astype(fts_ref.dtype)


# --------------- stage 2: PReLU(adj @ seq_fts + bias), block-sparse --------- #
def _gcn_spmm_kernel(cids_ref, cnt_ref, adj_ref, fts_ref, b_ref, a_ref, out_ref):
    # cids_ref: (nri, kmax) int32 SMEM   -- scalar-prefetched column-tile ids
    # cnt_ref:  (nri,)      int32 SMEM   -- nonzero-tile counts per row tile
    # adj_ref:  (tm, tk) bf16 adjacency tile (data-dependent column tile)
    # fts_ref:  (tk, dp) bf16 seq_fts tile matching the adjacency column tile
    # b_ref:    (1, dp) f32 bias ; a_ref: (1, dp) f32 PReLU alpha (shared scalar)
    # out_ref:  (tm, dp) f32 output tile == accumulator (resident across k)
    i = pl.program_id(0)
    k = pl.program_id(1)

    @pl.when(k == 0)
    def _():
        out_ref[...] = jnp.broadcast_to(b_ref[...], out_ref.shape)

    @pl.when(k < cnt_ref[i])
    def _():
        out_ref[...] += jnp.dot(
            adj_ref[...], fts_ref[...], preferred_element_type=jnp.float32
        )

    @pl.when(k == pl.num_programs(1) - 1)
    def _():
        out = out_ref[...]
        out_ref[...] = jnp.where(out >= 0.0, out, a_ref[...] * out)


# --------------------------------- wrapper ----------------------------------- #
@functools.partial(jax.jit, static_argnames=("n", "tm", "tk"))
def _gcn_forward(col_ids, cnt, adj_p, seq, w, bias, alpha, *, n, tm, tk):
    nr, nc = adj_p.shape
    d_in = seq.shape[1]
    d_out = w.shape[0]
    din = _round_up(d_in, 8)
    dp = _round_up(d_out, 128)          # lane-dense hidden dim -> unmasked stores

    # Cheap per-call padding (adjacency pad/cast already done in prepare_adjacency).
    seq_p = jnp.pad(seq, ((0, nc - n), (0, din - d_in))).astype(jnp.bfloat16)
    wt_p = jnp.pad(w.T, ((0, din - d_in), (0, dp - d_out))).astype(jnp.bfloat16)
    b_p = jnp.pad(bias.reshape(1, -1), ((0, 0), (0, dp - d_out))).astype(jnp.float32)
    a_p = jnp.full((1, dp), alpha, dtype=jnp.float32)

    # Stage 1: seq_fts = seq @ W^T, hoisted out of the adjacency stream.
    seq_fts = pl.pallas_call(
        _fc_kernel,
        out_shape=jax.ShapeDtypeStruct((nc, dp), jnp.bfloat16),
        grid_spec=pltpu.PrefetchScalarGridSpec(
            num_scalar_prefetch=0,
            grid=(nc // tk,),
            in_specs=[
                pl.BlockSpec((tk, din), lambda i: (i, 0)),
                pl.BlockSpec((din, dp), lambda i: (0, 0)),
            ],
            out_specs=pl.BlockSpec((tk, dp), lambda i: (i, 0)),
        ),
        compiler_params=pltpu.CompilerParams(dimension_semantics=("parallel",)),
    )(seq_p, wt_p)

    # Stage 2: out = PReLU(adj @ seq_fts + bias), streaming adjacency tiles and
    # skipping all-zero tiles via scalar-prefetched block structure.
    nri = nr // tm
    kmax = col_ids.shape[1]
    vmem_need = (
        2 * tm * tk * 2      # double-buffered bf16 adjacency tiles
        + 2 * tk * dp * 2    # double-buffered bf16 seq_fts tiles
        + 2 * tm * dp * 4    # f32 output/accumulator tile
        + 4 * dp * 4         # bias + alpha
    )
    vmem_limit = min(64 << 20, max(32 << 20, vmem_need + (8 << 20)))

    out = pl.pallas_call(
        _gcn_spmm_kernel,
        out_shape=jax.ShapeDtypeStruct((nr, dp), jnp.float32),
        grid_spec=pltpu.PrefetchScalarGridSpec(
            num_scalar_prefetch=2,
            grid=(nri, kmax),
            in_specs=[
                pl.BlockSpec((tm, tk), lambda i, k, cids, cn: (i, cids[i, k])),
                pl.BlockSpec((tk, dp), lambda i, k, cids, cn: (cids[i, k], 0)),
                pl.BlockSpec((1, dp), lambda i, k, cids, cn: (0, 0)),
                pl.BlockSpec((1, dp), lambda i, k, cids, cn: (0, 0)),
            ],
            out_specs=pl.BlockSpec((tm, dp), lambda i, k, cids, cn: (i, 0)),
        ),
        compiler_params=pltpu.CompilerParams(
            dimension_semantics=("parallel", "arbitrary"),
            vmem_limit_bytes=vmem_limit,
        ),
    )(col_ids, cnt, adj_p, seq_fts, b_p, a_p)
    return out[:n, :d_out]


def gcn_forward(seq, w, bias, alpha, prep: PreparedAdjacency):
    """PReLU(adj @ (seq @ W^T) + bias); `w` uses torch Linear layout [out, in]."""
    return _gcn_forward(
        prep.col_ids, prep.cnt, prep.adj, seq, w, bias, alpha,
        n=prep.n, tm=prep.tm, tk=prep.tk,
    )


# ---------------------------------- demo ------------------------------------- #
if __name__ == "__main__":
    key = jax.random.PRNGKey(0)
    k_h, k_adj, k_w = jax.random.split(key, 3)

    N, D_IN, D_OUT = 512, 32, 32

    seq = jax.random.normal(k_h, (N, D_IN), dtype=jnp.float32)

    # Random adjacency with self-loops (dense stand-in for torch.spmm's sparse adj).
    adj = (jax.random.uniform(k_adj, (N, N)) < 0.05).astype(jnp.float32)
    adj = jnp.clip(adj + jnp.eye(N, dtype=jnp.float32), 0.0, 1.0)

    # GCN params: torch Linear weight is [out, in], xavier_normal_ gain=1.414,
    # bias filled with 0, nn.PReLU() default alpha=0.25 (single shared scalar).
    gain = 1.414
    std = gain * (2.0 / (D_IN + D_OUT)) ** 0.5
    w = std * jax.random.normal(k_w, (D_OUT, D_IN), dtype=jnp.float32)
    bias = jnp.zeros((D_OUT,), dtype=jnp.float32)
    alpha = jnp.float32(0.25)

    # One-time adjacency prep (pad + bf16 cast + block-sparsity structure).
    prep = prepare_adjacency(adj, tm=512, tk=1024)

    out = gcn_forward(seq, w, bias, alpha, prep)
    out = jax.block_until_ready(out)

    # Plain-JAX f32 reference (loose tolerance: matmul operands are bf16).
    ref = adj @ (seq @ w.T) + bias
    ref = jnp.where(ref >= 0.0, ref, 0.25 * ref)
    rel_err = float(jnp.max(jnp.abs(out - ref)) / (jnp.max(jnp.abs(ref)) + 1e-6))

    assert out.shape == (N, D_OUT)
    assert rel_err < 2e-2, f"relative error too large: {rel_err}"
    print("KERNEL_OK")
</pallas_src>

<mosaic_0001>
module attributes {stable_mosaic.version = 11 : i64} {
  func.func @_fc_kernel(%arg0: i32, %arg1: memref<512x32xbf16, #tpu.memory_space<vmem>>, %arg2: memref<32x128xbf16, #tpu.memory_space<vmem>>, %arg3: memref<512x128xbf16, #tpu.memory_space<vmem>>) attributes {dimension_semantics = [#tpu.dimension_semantics<parallel>], iteration_bounds = array<i64: 1>, scalar_prefetch = 0 : i64, scratch_operands = 0 : i64, tpu.core_type = #tpu.core_type<tc>, window_params = [{transform_indices = @transform_0, window_bounds = array<i64: 512, 32>}, {pipeline_mode = #tpu.pipeline_mode<synchronous>, transform_indices = @transform_1, window_bounds = array<i64: 32, 128>}, {transform_indices = @transform_2, window_bounds = array<i64: 512, 128>}]} {
    %c0 = arith.constant 0 : index
    %c0_0 = arith.constant 0 : index
    %0 = vector.load %arg1[%c0, %c0_0] : memref<512x32xbf16, #tpu.memory_space<vmem>>, vector<512x32xbf16>
    %c0_1 = arith.constant 0 : index
    %c0_2 = arith.constant 0 : index
    %1 = vector.load %arg2[%c0_1, %c0_2] : memref<32x128xbf16, #tpu.memory_space<vmem>>, vector<32x128xbf16>
    %cst = arith.constant dense<0.000000e+00> : vector<512x128xf32>
    %2 = tpu.matmul %0, %1, %cst {dimension_numbers = #tpu.dot_dimension_numbers<[1], [0], [0], [1], [0, 0, 1, 1], [], []>} : vector<512x32xbf16>, vector<32x128xbf16>, vector<512x128xf32> -> vector<512x128xf32>
    %3 = arith.truncf %2 : vector<512x128xf32> to vector<512x128xbf16>
    %c0_3 = arith.constant 0 : index
    %c0_4 = arith.constant 0 : index
    %4 = vector.load %arg3[%c0_3, %c0_4] : memref<512x128xbf16, #tpu.memory_space<vmem>>, vector<512x128xbf16>
    tpu.vector_store %arg3[%c0_3, %c0_4], %3 {strides = array<i32>} : memref<512x128xbf16, #tpu.memory_space<vmem>>, vector<512x128xbf16>,
    return
  }
  func.func @transform_0(%arg0: i32) -> (i32, i32) {
    %c0_i32 = arith.constant 0 : i32
    %c0_i32_0 = arith.constant 0 : i32
    return %arg0, %c0_i32 : i32, i32
  }
  func.func @transform_1(%arg0: i32) -> (i32, i32) {
    %c0_i32 = arith.constant 0 : i32
    %c0_i32_0 = arith.constant 0 : i32
    %c0_i32_1 = arith.constant 0 : i32
    return %c0_i32, %c0_i32_0 : i32, i32
  }
  func.func @transform_2(%arg0: i32) -> (i32, i32) {
    %c0_i32 = arith.constant 0 : i32
    %c0_i32_0 = arith.constant 0 : i32
    return %arg0, %c0_i32 : i32, i32
  }
}

module attributes {stable_mosaic.version = 11 : i64} {
  func.func @_gcn_spmm_kernel(%arg0: i32, %arg1: i32, %arg2: memref<2x1xi32, #tpu.memory_space<smem>>, %arg3: memref<2xi32, #tpu.memory_space<smem>>, %arg4: memref<256x512xbf16, #tpu.memory_space<vmem>>, %arg5: memref<512x128xbf16, #tpu.memory_space<vmem>>, %arg6: memref<1x128xf32, #tpu.memory_space<vmem>>, %arg7: memref<1x128xf32, #tpu.memory_space<vmem>>, %arg8: memref<256x128xf32, #tpu.memory_space<vmem>>) attributes {dimension_semantics = [#tpu.dimension_semantics<parallel>, #tpu.dimension_semantics<arbitrary>], iteration_bounds = array<i64: 2, 1>, scalar_prefetch = 2 : i64, scratch_operands = 0 : i64, tpu.core_type = #tpu.core_type<tc>, window_params = [{transform_indices = @transform_0, window_bounds = array<i64: 256, 512>}, {transform_indices = @transform_1, window_bounds = array<i64: 512, 128>}, {pipeline_mode = #tpu.pipeline_mode<synchronous>, transform_indices = @transform_2, window_bounds = array<i64: 1, 128>}, {pipeline_mode = #tpu.pipeline_mode<synchronous>, transform_indices = @transform_3, window_bounds = array<i64: 1, 128>}, {transform_indices = @transform_4, window_bounds = array<i64: 256, 128>}]} {
    %c0_i32 = arith.constant 0 : i32
    %0 = arith.cmpi eq, %arg1, %c0_i32 : i32
    %1 = arith.extui %0 : i1 to i32
    %c0_i32_0 = arith.constant 0 : i32
    %2 = arith.cmpi ne, %1, %c0_i32_0 : i32
    scf.if %2 {
      %c0 = arith.constant 0 : index
      %c0_4 = arith.constant 0 : index
      %11 = vector.load %arg6[%c0, %c0_4] : memref<1x128xf32, #tpu.memory_space<vmem>>, vector<1x128xf32>
      %12 = vector.shape_cast %11 : vector<1x128xf32> to vector<1x128xf32>
      %13 = vector.broadcast %12 : vector<1x128xf32> to vector<256x128xf32>
      %c0_5 = arith.constant 0 : index
      %c0_6 = arith.constant 0 : index
      %14 = vector.load %arg8[%c0_5, %c0_6] : memref<256x128xf32, #tpu.memory_space<vmem>>, vector<256x128xf32>
      tpu.vector_store %arg8[%c0_5, %c0_6], %13 {strides = array<i32>} : memref<256x128xf32, #tpu.memory_space<vmem>>, vector<256x128xf32>,
    } else {
    }
    %3 = arith.index_cast %arg0 : i32 to index
    %4 = memref.load %arg3[%3] : memref<2xi32, #tpu.memory_space<smem>>
    %5 = arith.cmpi slt, %arg1, %4 : i32
    %6 = arith.extui %5 : i1 to i32
    %c0_i32_1 = arith.constant 0 : i32
    %7 = arith.cmpi ne, %6, %c0_i32_1 : i32
    scf.if %7 {
      %c0 = arith.constant 0 : index
      %c0_4 = arith.constant 0 : index
      %11 = vector.load %arg8[%c0, %c0_4] : memref<256x128xf32, #tpu.memory_space<vmem>>, vector<256x128xf32>
      %c0_5 = arith.constant 0 : index
      %c0_6 = arith.constant 0 : index
      %12 = vector.load %arg4[%c0_5, %c0_6] : memref<256x512xbf16, #tpu.memory_space<vmem>>, vector<256x512xbf16>
      %c0_7 = arith.constant 0 : index
      %c0_8 = arith.constant 0 : index
      %13 = vector.load %arg5[%c0_7, %c0_8] : memref<512x128xbf16, #tpu.memory_space<vmem>>, vector<512x128xbf16>
      %cst = arith.constant dense<0.000000e+00> : vector<256x128xf32>
      %14 = tpu.matmul %12, %13, %cst {dimension_numbers = #tpu.dot_dimension_numbers<[1], [0], [0], [1], [0, 0, 1, 1], [], []>} : vector<256x512xbf16>, vector<512x128xbf16>, vector<256x128xf32> -> vector<256x128xf32>
      %15 = arith.addf %11, %14 : vector<256x128xf32>
      %c0_9 = arith.constant 0 : index
      %c0_10 = arith.constant 0 : index
      %16 = vector.load %arg8[%c0_9, %c0_10] : memref<256x128xf32, #tpu.memory_space<vmem>>, vector<256x128xf32>
      tpu.vector_store %arg8[%c0_9, %c0_10], %15 {strides = array<i32>} : memref<256x128xf32, #tpu.memory_space<vmem>>, vector<256x128xf32>,
    } else {
    }
    %c0_i32_2 = arith.constant 0 : i32
    %8 = arith.cmpi eq, %arg1, %c0_i32_2 : i32
    %9 = arith.extui %8 : i1 to i32
    %c0_i32_3 = arith.constant 0 : i32
    %10 = arith.cmpi ne, %9, %c0_i32_3 : i32
    scf.if %10 {
      %c0 = arith.constant 0 : index
      %c0_4 = arith.constant 0 : index
      %11 = vector.load %arg8[%c0, %c0_4] : memref<256x128xf32, #tpu.memory_space<vmem>>, vector<256x128xf32>
      %cst = arith.constant 0.000000e+00 : f32
      %12 = vector.broadcast %cst : f32 to vector<256x128xf32>
      %13 = arith.cmpf oge, %11, %12 : vector<256x128xf32>
      %c0_5 = arith.constant 0 : index
      %c0_6 = arith.constant 0 : index
      %14 = vector.load %arg7[%c0_5, %c0_6] : memref<1x128xf32, #tpu.memory_space<vmem>>, vector<1x128xf32>
      %15 = vector.broadcast %14 : vector<1x128xf32> to vector<256x128xf32>
      %16 = arith.mulf %15, %11 : vector<256x128xf32>
      %17 = arith.select %13, %11, %16 : vector<256x128xi1>, vector<256x128xf32>
      %c0_7 = arith.constant 0 : index
      %c0_8 = arith.constant 0 : index
      %18 = vector.load %arg8[%c0_7, %c0_8] : memref<256x128xf32, #tpu.memory_space<vmem>>, vector<256x128xf32>
      tpu.vector_store %arg8[%c0_7, %c0_8], %17 {strides = array<i32>} : memref<256x128xf32, #tpu.memory_space<vmem>>, vector<256x128xf32>,
    } else {
    }
    return
  }
  func.func @transform_0(%arg0: i32, %arg1: i32, %arg2: memref<2x1xi32, #tpu.memory_space<smem>>, %arg3: memref<2xi32, #tpu.memory_space<smem>>) -> (i32, i32) {
    %0 = arith.index_cast %arg0 : i32 to index
    %1 = arith.index_cast %arg1 : i32 to index
    %2 = memref.load %arg2[%0, %1] : memref<2x1xi32, #tpu.memory_space<smem>>
    %c0_i32 = arith.constant 0 : i32
    return %arg0, %2 : i32, i32
  }
  func.func @transform_1(%arg0: i32, %arg1: i32, %arg2: memref<2x1xi32, #tpu.memory_space<smem>>, %arg3: memref<2xi32, #tpu.memory_space<smem>>) -> (i32, i32) {
    %0 = arith.index_cast %arg0 : i32 to index
    %1 = arith.index_cast %arg1 : i32 to index
    %2 = memref.load %arg2[%0, %1] : memref<2x1xi32, #tpu.memory_space<smem>>
    %c0_i32 = arith.constant 0 : i32
    %c0_i32_0 = arith.constant 0 : i32
    return %2, %c0_i32 : i32, i32
  }
  func.func @transform_2(%arg0: i32, %arg1: i32, %arg2: memref<2x1xi32, #tpu.memory_space<smem>>, %arg3: memref<2xi32, #tpu.memory_space<smem>>) -> (i32, i32) {
    %c0_i32 = arith.constant 0 : i32
    %c0_i32_0 = arith.constant 0 : i32
    %c0_i32_1 = arith.constant 0 : i32
    return %c0_i32, %c0_i32_0 : i32, i32
  }
  func.func @transform_3(%arg0: i32, %arg1: i32, %arg2: memref<2x1xi32, #tpu.memory_space<smem>>, %arg3: memref<2xi32, #tpu.memory_space<smem>>) -> (i32, i32) {
    %c0_i32 = arith.constant 0 : i32
    %c0_i32_0 = arith.constant 0 : i32
    %c0_i32_1 = arith.constant 0 : i32
    return %c0_i32, %c0_i32_0 : i32, i32
  }
  func.func @transform_4(%arg0: i32, %arg1: i32, %arg2: memref<2x1xi32, #tpu.memory_space<smem>>, %arg3: memref<2xi32, #tpu.memory_space<smem>>) -> (i32, i32) {
    %c0_i32 = arith.constant 0 : i32
    %c0_i32_0 = arith.constant 0 : i32
    return %arg0, %c0_i32 : i32, i32
  }
}

</mosaic_0001>

<llo_original>
// kernel: _gcn_forward.2
$region0: #{_gcn_forward.2}
  #allocation0 [shape = 'u32[]', space=smem, size = 0x4, offset = 0x4, fixed_abs, tag = 'smem constant byte address 0x4 - core index']
  #allocation1 [shape = 'u32[72,128]{1,0:T(1,128)}', space=vmem, size = 0x9000, scoped, tag = 'internal scratch']
  %s0 = inlined_call_operand.vmem [shape: bf16[512,32], index: 0, kind: input, shape index: {}]
  %s1 = inlined_call_operand.vmem [shape: bf16[32,128], index: 1, kind: input, shape index: {}]
  %s2 = inlined_call_operand.vmem [shape: bf16[512,128], index: 2, kind: output, shape index: {}]
  %s3 = sld [smem:[#allocation0]]
  $region18: #{_gcn_forward.2} parent=0
    _
  %s5 = ssub.s32 1, %s3
  %s6 = scalar_select 0, %s5, %s3
  // Predicated region
  $region2: #{_gcn_forward.2} parent=0 // pred_check
    _
  $region3: #{_gcn_forward.2} parent=0 // pred_check_branch
    %8 = sbr.rel (0) target = $region5
  $region4: #{_gcn_forward.2} parent=0 // pred_region
    _
  $region5: #{_gcn_forward.2} parent=0 // pred_fallthru
    _
  // Predicated region
  $region6: #{_gcn_forward.2} parent=0 // pred_check
    _
  $region7: #{_gcn_forward.2} parent=0 // pred_check_branch
    %10 = sbr.rel (0) target = $region9
  $region8: #{_gcn_forward.2} parent=0 // pred_region
    _
  $region9: #{_gcn_forward.2} parent=0 // pred_fallthru
    _
  %v12 = vld [vmem:[%s0] sm:$0xf]
  %v13 = vld [vmem:[%s0 + $0x4] sm:$0xf]
  %v14 = vld [vmem:[%s0 + $0x8] sm:$0xf]
  %v15 = vld [vmem:[%s0 + $0xc] sm:$0xf]
  %v16 = vld [vmem:[%s0 + $0x10] sm:$0xf]
  %v17 = vld [vmem:[%s0 + $0x14] sm:$0xf]
  %v18 = vld [vmem:[%s0 + $0x18] sm:$0xf]
  %v19 = vld [vmem:[%s0 + $0x1c] sm:$0xf]
  %v20 = vld [vmem:[%s0 + $0x20] sm:$0xf]
  %v21 = vld [vmem:[%s0 + $0x24] sm:$0xf]
  %v22 = vld [vmem:[%s0 + $0x28] sm:$0xf]
  %v23 = vld [vmem:[%s0 + $0x2c] sm:$0xf]
  %v24 = vld [vmem:[%s0 + $0x30] sm:$0xf]
  %v25 = vld [vmem:[%s0 + $0x34] sm:$0xf]
  %v26 = vld [vmem:[%s0 + $0x38] sm:$0xf]
  %v27 = vld [vmem:[%s0 + $0x3c] sm:$0xf]
  %v28 = vld [vmem:[%s0 + $0x40] sm:$0xf]
  %v29 = vld [vmem:[%s0 + $0x44] sm:$0xf]
  %v30 = vld [vmem:[%s0 + $0x48] sm:$0xf]
  %v31 = vld [vmem:[%s0 + $0x4c] sm:$0xf]
  %v32 = vld [vmem:[%s0 + $0x50] sm:$0xf]
  %v33 = vld [vmem:[%s0 + $0x54] sm:$0xf]
  %v34 = vld [vmem:[%s0 + $0x58] sm:$0xf]
  %v35 = vld [vmem:[%s0 + $0x5c] sm:$0xf]
  %v36 = vld [vmem:[%s0 + $0x60] sm:$0xf]
  %v37 = vld [vmem:[%s0 + $0x64] sm:$0xf]
  %v38 = vld [vmem:[%s0 + $0x68] sm:$0xf]
  %v39 = vld [vmem:[%s0 + $0x6c] sm:$0xf]
  %v40 = vld [vmem:[%s0 + $0x70] sm:$0xf]
  %v41 = vld [vmem:[%s0 + $0x74] sm:$0xf]
  %v42 = vld [vmem:[%s0 + $0x78] sm:$0xf]
  %v43 = vld [vmem:[%s0 + $0x7c] sm:$0xf]
  %v44 = vld [vmem:[%s0 + $0x80] sm:$0xf]
  %v45 = vld [vmem:[%s0 + $0x84] sm:$0xf]
  %v46 = vld [vmem:[%s0 + $0x88] sm:$0xf]
  %v47 = vld [vmem:[%s0 + $0x8c] sm:$0xf]
  %v48 = vld [vmem:[%s0 + $0x90] sm:$0xf]
  %v49 = vld [vmem:[%s0 + $0x94] sm:$0xf]
  %v50 = vld [vmem:[%s0 + $0x98] sm:$0xf]
  %v51 = vld [vmem:[%s0 + $0x9c] sm:$0xf]
  %v52 = vld [vmem:[%s0 + $0xa0] sm:$0xf]
  %v53 = vld [vmem:[%s0 + $0xa4] sm:$0xf]
  %v54 = vld [vmem:[%s0 + $0xa8] sm:$0xf]
  %v55 = vld [vmem:[%s0 + $0xac] sm:$0xf]
  %v56 = vld [vmem:[%s0 + $0xb0] sm:$0xf]
  %v57 = vld [vmem:[%s0 + $0xb4] sm:$0xf]
  %v58 = vld [vmem:[%s0 + $0xb8] sm:$0xf]
  %v59 = vld [vmem:[%s0 + $0xbc] sm:$0xf]
  %v60 = vld [vmem:[%s0 + $0xc0] sm:$0xf]
  %v61 = vld [vmem:[%s0 + $0xc4] sm:$0xf]
  %v62 = vld [vmem:[%s0 + $0xc8] sm:$0xf]
  %v63 = vld [vmem:[%s0 + $0xcc] sm:$0xf]
  %v64 = vld [vmem:[%s0 + $0xd0] sm:$0xf]
  %v65 = vld [vmem:[%s0 + $0xd4] sm:$0xf]
  %v66 = vld [vmem:[%s0 + $0xd8] sm:$0xf]
  %v67 = vld [vmem:[%s0 + $0xdc] sm:$0xf]
  %v68 = vld [vmem:[%s0 + $0xe0] sm:$0xf]
  %v69 = vld [vmem:[%s0 + $0xe4] sm:$0xf]
  %v70 = vld [vmem:[%s0 + $0xe8] sm:$0xf]
  %v71 = vld [vmem:[%s0 + $0xec] sm:$0xf]
  %v72 = vld [vmem:[%s0 + $0xf0] sm:$0xf]
  %v73 = vld [vmem:[%s0 + $0xf4] sm:$0xf]
  %v74 = vld [vmem:[%s0 + $0xf8] sm:$0xf]
  %v75 = vld [vmem:[%s0 + $0xfc] sm:$0xf]
  %v76 = vld [vmem:[%s1] sm:$0xf]
  %v77 = vld [vmem:[%s1 + $0x4] sm:$0xf]
  %v78 = vld [vmem:[%s1 + $0x8] sm:$0xf]
  %v79 = vld [vmem:[%s1 + $0xc] sm:$0xf]
  %v144 = vunpack.c.l.b16 %v12
  %v145 = vunpack.c.l.b16 %v13
  %v146 = vunpack.c.l.b16 %v14
  %v147 = vunpack.c.l.b16 %v15
  %v148 = vunpack.c.l.b16 %v16
  %v149 = vunpack.c.l.b16 %v17
  %v150 = vunpack.c.l.b16 %v18
  %v151 = vunpack.c.l.b16 %v19
  %v152 = vunpack.c.l.b16 %v20
  %v153 = vunpack.c.l.b16 %v21
  %v154 = vunpack.c.l.b16 %v22
  %v155 = vunpack.c.l.b16 %v23
  %v156 = vunpack.c.l.b16 %v24
  %v157 = vunpack.c.l.b16 %v25
  %v158 = vunpack.c.l.b16 %v26
  %v159 = vunpack.c.l.b16 %v27
  %v160 = vunpack.c.l.b16 %v28
  %v161 = vunpack.c.l.b16 %v29
  %v162 = vunpack.c.l.b16 %v30
  %v163 = vunpack.c.l.b16 %v31
  %v164 = vunpack.c.l.b16 %v32
  %v165 = vunpack.c.l.b16 %v33
  %v166 = vunpack.c.l.b16 %v34
  %v167 = vunpack.c.l.b16 %v35
  %v168 = vunpack.c.l.b16 %v36
  %v169 = vunpack.c.l.b16 %v37
  %v170 = vunpack.c.l.b16 %v38
  %v171 = vunpack.c.l.b16 %v39
  %v172 = vunpack.c.l.b16 %v40
  %v173 = vunpack.c.l.b16 %v41
  %v174 = vunpack.c.l.b16 %v42
  %v175 = vunpack.c.l.b16 %v43
  %v176 = vunpack.c.l.b16 %v44
  %v177 = vunpack.c.l.b16 %v45
  %v178 = vunpack.c.l.b16 %v46
  %v179 = vunpack.c.l.b16 %v47
  %v180 = vunpack.c.l.b16 %v48
  %v181 = vunpack.c.l.b16 %v49
  %v182 = vunpack.c.l.b16 %v50
  %v183 = vunpack.c.l.b16 %v51
  %v184 = vunpack.c.l.b16 %v52
  %v185 = vunpack.c.l.b16 %v53
  %v186 = vunpack.c.l.b16 %v54
  %v187 = vunpack.c.l.b16 %v55
  %v188 = vunpack.c.l.b16 %v56
  %v189 = vunpack.c.l.b16 %v57
  %v190 = vunpack.c.l.b16 %v58
  %v191 = vunpack.c.l.b16 %v59
  %v192 = vunpack.c.l.b16 %v60
  %v193 = vunpack.c.l.b16 %v61
  %v194 = vunpack.c.l.b16 %v62
  %v195 = vunpack.c.l.b16 %v63
  %v196 = vunpack.c.l.b16 %v64
  %v197 = vunpack.c.l.b16 %v65
  %v198 = vunpack.c.l.b16 %v66
  %v199 = vunpack.c.l.b16 %v67
  %v200 = vunpack.c.l.b16 %v68
  %v201 = vunpack.c.l.b16 %v69
  %v202 = vunpack.c.l.b16 %v70
  %v203 = vunpack.c.l.b16 %v71
  %v204 = vunpack.c.l.b16 %v72
  %v205 = vunpack.c.l.b16 %v73
  %v206 = vunpack.c.l.b16 %v74
  %v207 = vunpack.c.l.b16 %v75
  %v208 = vpack.c.b16 %v145, %v144
  %v209 = vpack.c.b16 %v147, %v146
  %v210 = vpack.c.b16 %v149, %v148
  %v211 = vpack.c.b16 %v151, %v150
  %v212 = vpack.c.b16 %v153, %v152
  %v213 = vpack.c.b16 %v155, %v154
  %v214 = vpack.c.b16 %v157, %v156
  %v215 = vpack.c.b16 %v159, %v158
  %v216 = vpack.c.b16 %v161, %v160
  %v217 = vpack.c.b16 %v163, %v162
  %v218 = vpack.c.b16 %v165, %v164
  %v219 = vpack.c.b16 %v167, %v166
  %v220 = vpack.c.b16 %v169, %v168
  %v221 = vpack.c.b16 %v171, %v170
  %v222 = vpack.c.b16 %v173, %v172
  %v223 = vpack.c.b16 %v175, %v174
  %v224 = vpack.c.b16 %v177, %v176
  %v225 = vpack.c.b16 %v179, %v178
  %v226 = vpack.c.b16 %v181, %v180
  %v227 = vpack.c.b16 %v183, %v182
  %v228 = vpack.c.b16 %v185, %v184
  %v229 = vpack.c.b16 %v187, %v186
  %v230 = vpack.c.b16 %v189, %v188
  %v231 = vpack.c.b16 %v191, %v190
  %v232 = vpack.c.b16 %v193, %v192
  %v233 = vpack.c.b16 %v195, %v194
  %v234 = vpack.c.b16 %v197, %v196
  %v235 = vpack.c.b16 %v199, %v198
  %v236 = vpack.c.b16 %v201, %v200
  %v237 = vpack.c.b16 %v203, %v202
  %v238 = vpack.c.b16 %v205, %v204
  %v239 = vpack.c.b16 %v207, %v206
  %v244 = vunpack.c.l.b16 %v76
  %v245 = vunpack.c.l.b16 %v77
  %v246 = vunpack.c.l.b16 %v78
  %v247 = vunpack.c.l.b16 %v79
  %v248 = vpack.c.b16 %v245, %v244
  %v249 = vpack.c.b16 %v247, %v246
  %vm252 = vcmask 261120
  %v254 = vsel %vm252, %v208, 0
  %v257 = vsel %vm252, %v209, 0
  %v260 = vsel %vm252, %v210, 0
  %v263 = vsel %vm252, %v211, 0
  %v266 = vsel %vm252, %v212, 0
  %v269 = vsel %vm252, %v213, 0
  %v272 = vsel %vm252, %v214, 0
  %v275 = vsel %vm252, %v215, 0
  %v278 = vsel %vm252, %v216, 0
  %v281 = vsel %vm252, %v217, 0
  %v284 = vsel %vm252, %v218, 0
  %v287 = vsel %vm252, %v219, 0
  %v290 = vsel %vm252, %v220, 0
  %v293 = vsel %vm252, %v221, 0
  %v296 = vsel %vm252, %v222, 0
  %v299 = vsel %vm252, %v223, 0
  %v302 = vsel %vm252, %v224, 0
  %v305 = vsel %vm252, %v225, 0
  %v308 = vsel %vm252, %v226, 0
  %v311 = vsel %vm252, %v227, 0
  %v314 = vsel %vm252, %v228, 0
  %v317 = vsel %vm252, %v229, 0
  %v320 = vsel %vm252, %v230, 0
  %v323 = vsel %vm252, %v231, 0
  %v326 = vsel %vm252, %v232, 0
  %v329 = vsel %vm252, %v233, 0
  %v332 = vsel %vm252, %v234, 0
  %v335 = vsel %vm252, %v235, 0
  %v338 = vsel %vm252, %v236, 0
  %v341 = vsel %vm252, %v237, 0
  %v344 = vsel %vm252, %v238, 0
  %v347 = vsel %vm252, %v239, 0
  %349 = vmatpush.bf16.msra.mxu0 0
  %350 = vmatpush.bf16.msra.mxu0 0
  %351 = vmatpush.bf16.msra.mxu0 0
  %352 = vmatpush.bf16.msra.mxu0 0
  %353 = vmatpush.bf16.msra.mxu0 0
  %354 = vmatpush.bf16.msra.mxu0 0
  %355 = vmatpush.bf16.msra.mxu0 %v249
  %356 = vmatpush.bf16.msra.mxu0 %v248
  %357 = vmatmul.bf16.gmra.mxu0 %v254
  %v358 = vpop.f32.mrf.mxu0
  %v359 = vadd.f32 0.0, %v358
  %v360 = vpop.f32.mrf.mxu0
  %v361 = vadd.f32 0.0, %v360
  %362 = vmatmul.bf16.gmra.mxu0 %v257
  %v363 = vpop.f32.mrf.mxu0
  %v364 = vadd.f32 0.0, %v363
  %v365 = vpop.f32.mrf.mxu0
  %v366 = vadd.f32 0.0, %v365
  %367 = vmatmul.bf16.gmra.mxu0 %v260
  %v368 = vpop.f32.mrf.mxu0
  %v369 = vadd.f32 0.0, %v368
  %v370 = vpop.f32.mrf.mxu0
  %v371 = vadd.f32 0.0, %v370
  %372 = vmatmul.bf16.gmra.mxu0 %v263
  %v373 = vpop.f32.mrf.mxu0
  %v374 = vadd.f32 0.0, %v373
  %v375 = vpop.f32.mrf.mxu0
  %v376 = vadd.f32 0.0, %v375
  %377 = vmatmul.bf16.gmra.mxu0 %v266
  %v378 = vpop.f32.mrf.mxu0
  %v379 = vadd.f32 0.0, %v378
  %v380 = vpop.f32.mrf.mxu0
  %v381 = vadd.f32 0.0, %v380
  %382 = vmatmul.bf16.gmra.mxu0 %v269
  %v383 = vpop.f32.mrf.mxu0
  %v384 = vadd.f32 0.0, %v383
  %v385 = vpop.f32.mrf.mxu0
  %v386 = vadd.f32 0.0, %v385
  %387 = vmatmul.bf16.gmra.mxu0 %v272
  %v388 = vpop.f32.mrf.mxu0
  %v389 = vadd.f32 0.0, %v388
  %v390 = vpop.f32.mrf.mxu0
  %v391 = vadd.f32 0.0, %v390
  %392 = vmatmul.bf16.gmra.mxu0 %v275
  %v393 = vpop.f32.mrf.mxu0
  %v394 = vadd.f32 0.0, %v393
  %v395 = vpop.f32.mrf.mxu0
  %v396 = vadd.f32 0.0, %v395
  %397 = vmatmul.bf16.gmra.mxu0 %v278
  %v398 = vpop.f32.mrf.mxu0
  %v399 = vadd.f32 0.0, %v398
  %v400 = vpop.f32.mrf.mxu0
  %v401 = vadd.f32 0.0, %v400
  %402 = vmatmul.bf16.gmra.mxu0 %v281
  %v403 = vpop.f32.mrf.mxu0
  %v404 = vadd.f32 0.0, %v403
  %v405 = vpop.f32.mrf.mxu0
  %v406 = vadd.f32 0.0, %v405
  %407 = vmatmul.bf16.gmra.mxu0 %v284
  %v408 = vpop.f32.mrf.mxu0
  %v409 = vadd.f32 0.0, %v408
  %v410 = vpop.f32.mrf.mxu0
  %v411 = vadd.f32 0.0, %v410
  %412 = vmatmul.bf16.gmra.mxu0 %v287
  %v413 = vpop.f32.mrf.mxu0
  %v414 = vadd.f32 0.0, %v413
  %v415 = vpop.f32.mrf.mxu0
  %v416 = vadd.f32 0.0, %v415
  %417 = vmatmul.bf16.gmra.mxu0 %v290
  %v418 = vpop.f32.mrf.mxu0
  %v419 = vadd.f32 0.0, %v418
  %v420 = vpop.f32.mrf.mxu0
  %v421 = vadd.f32 0.0, %v420
  %422 = vmatmul.bf16.gmra.mxu0 %v293
  %v423 = vpop.f32.mrf.mxu0
  %v424 = vadd.f32 0.0, %v423
  %v425 = vpop.f32.mrf.mxu0
  %v426 = vadd.f32 0.0, %v425
  %427 = vmatmul.bf16.gmra.mxu0 %v296
  %v428 = vpop.f32.mrf.mxu0
  %v429 = vadd.f32 0.0, %v428
  %v430 = vpop.f32.mrf.mxu0
  %v431 = vadd.f32 0.0, %v430
  %432 = vmatmul.bf16.gmra.mxu0 %v299
  %v433 = vpop.f32.mrf.mxu0
  %v434 = vadd.f32 0.0, %v433
  %v435 = vpop.f32.mrf.mxu0
  %v436 = vadd.f32 0.0, %v435
  %437 = vmatmul.bf16.gmra.mxu0 %v302
  %v438 = vpop.f32.mrf.mxu0
  %v439 = vadd.f32 0.0, %v438
  %v440 = vpop.f32.mrf.mxu0
  %v441 = vadd.f32 0.0, %v440
  %442 = vmatmul.bf16.gmra.mxu0 %v305
  %v443 = vpop.f32.mrf.mxu0
  %v444 = vadd.f32 0.0, %v443
  %v445 = vpop.f32.mrf.mxu0
  %v446 = vadd.f32 0.0, %v445
  %447 = vmatmul.bf16.gmra.mxu0 %v308
  %v448 = vpop.f32.mrf.mxu0
  %v449 = vadd.f32 0.0, %v448
  %v450 = vpop.f32.mrf.mxu0
  %v451 = vadd.f32 0.0, %v450
  %452 = vmatmul.bf16.gmra.mxu0 %v311
  %v453 = vpop.f32.mrf.mxu0
  %v454 = vadd.f32 0.0, %v453
  %v455 = vpop.f32.mrf.mxu0
  %v456 = vadd.f32 0.0, %v455
  %457 = vmatmul.bf16.gmra.mxu0 %v314
  %v458 = vpop.f32.mrf.mxu0
  %v459 = vadd.f32 0.0, %v458
  %v460 = vpop.f32.mrf.mxu0
  %v461 = vadd.f32 0.0, %v460
  %462 = vmatmul.bf16.gmra.mxu0 %v317
  %v463 = vpop.f32.mrf.mxu0
  %v464 = vadd.f32 0.0, %v463
  %v465 = vpop.f32.mrf.mxu0
  %v466 = vadd.f32 0.0, %v465
  %467 = vmatmul.bf16.gmra.mxu0 %v320
  %v468 = vpop.f32.mrf.mxu0
  %v469 = vadd.f32 0.0, %v468
  %v470 = vpop.f32.mrf.mxu0
  %v471 = vadd.f32 0.0, %v470
  %472 = vmatmul.bf16.gmra.mxu0 %v323
  %v473 = vpop.f32.mrf.mxu0
  %v474 = vadd.f32 0.0, %v473
  %v475 = vpop.f32.mrf.mxu0
  %v476 = vadd.f32 0.0, %v475
  %477 = vmatmul.bf16.gmra.mxu0 %v326
  %v478 = vpop.f32.mrf.mxu0
  %v479 = vadd.f32 0.0, %v478
  %v480 = vpop.f32.mrf.mxu0
  %v481 = vadd.f32 0.0, %v480
  %482 = vmatmul.bf16.gmra.mxu0 %v329
  %v483 = vpop.f32.mrf.mxu0
  %v484 = vadd.f32 0.0, %v483
  %v485 = vpop.f32.mrf.mxu0
  %v486 = vadd.f32 0.0, %v485
  %487 = vmatmul.bf16.gmra.mxu0 %v332
  %v488 = vpop.f32.mrf.mxu0
  %v489 = vadd.f32 0.0, %v488
  %v490 = vpop.f32.mrf.mxu0
  %v491 = vadd.f32 0.0, %v490
  %492 = vmatmul.bf16.gmra.mxu0 %v335
  %v493 = vpop.f32.mrf.mxu0
  %v494 = vadd.f32 0.0, %v493
  %v495 = vpop.f32.mrf.mxu0
  %v496 = vadd.f32 0.0, %v495
  %497 = vmatmul.bf16.gmra.mxu0 %v338
  %v498 = vpop.f32.mrf.mxu0
  %v499 = vadd.f32 0.0, %v498
  %v500 = vpop.f32.mrf.mxu0
  %v501 = vadd.f32 0.0, %v500
  %502 = vmatmul.bf16.gmra.mxu0 %v341
  %v503 = vpop.f32.mrf.mxu0
  %v504 = vadd.f32 0.0, %v503
  %v505 = vpop.f32.mrf.mxu0
  %v506 = vadd.f32 0.0, %v505
  %507 = vmatmul.bf16.gmra.mxu0 %v344
  %v508 = vpop.f32.mrf.mxu0
  %v509 = vadd.f32 0.0, %v508
  %v510 = vpop.f32.mrf.mxu0
  %v511 = vadd.f32 0.0, %v510
  %512 = vmatmul.bf16.gmra.mxu0 %v347
  %v513 = vpop.f32.mrf.mxu0
  %v514 = vadd.f32 0.0, %v513
  %v515 = vpop.f32.mrf.mxu0
  %v516 = vadd.f32 0.0, %v515
  %517 = vdwg.mxu0
  %v518 = vpack.c.bf16 %v359, %v359
  %v519 = vpack.c.bf16 %v361, %v361
  %v520 = vpack.c.bf16 %v364, %v364
  %v521 = vpack.c.bf16 %v366, %v366
  %v522 = vpack.c.bf16 %v369, %v369
  %v523 = vpack.c.bf16 %v371, %v371
  %v524 = vpack.c.bf16 %v374, %v374
  %v525 = vpack.c.bf16 %v376, %v376
  %v526 = vpack.c.bf16 %v379, %v379
  %v527 = vpack.c.bf16 %v381, %v381
  %v528 = vpack.c.bf16 %v384, %v384
  %v529 = vpack.c.bf16 %v386, %v386
  %v530 = vpack.c.bf16 %v389, %v389
  %v531 = vpack.c.bf16 %v391, %v391
  %v532 = vpack.c.bf16 %v394, %v394
  %v533 = vpack.c.bf16 %v396, %v396
  %v534 = vpack.c.bf16 %v399, %v399
  %v535 = vpack.c.bf16 %v401, %v401
  %v536 = vpack.c.bf16 %v404, %v404
  %v537 = vpack.c.bf16 %v406, %v406
  %v538 = vpack.c.bf16 %v409, %v409
  %v539 = vpack.c.bf16 %v411, %v411
  %v540 = vpack.c.bf16 %v414, %v414
  %v541 = vpack.c.bf16 %v416, %v416
  %v542 = vpack.c.bf16 %v419, %v419
  %v543 = vpack.c.bf16 %v421, %v421
  %v544 = vpack.c.bf16 %v424, %v424
  %v545 = vpack.c.bf16 %v426, %v426
  %v546 = vpack.c.bf16 %v429, %v429
  %v547 = vpack.c.bf16 %v431, %v431
  %v548 = vpack.c.bf16 %v434, %v434
  %v549 = vpack.c.bf16 %v436, %v436
  %v550 = vpack.c.bf16 %v439, %v439
  %v551 = vpack.c.bf16 %v441, %v441
  %v552 = vpack.c.bf16 %v444, %v444
  %v553 = vpack.c.bf16 %v446, %v446
  %v554 = vpack.c.bf16 %v449, %v449
  %v555 = vpack.c.bf16 %v451, %v451
  %v556 = vpack.c.bf16 %v454, %v454
  %v557 = vpack.c.bf16 %v456, %v456
  %v558 = vpack.c.bf16 %v459, %v459
  %v559 = vpack.c.bf16 %v461, %v461
  %v560 = vpack.c.bf16 %v464, %v464
  %v561 = vpack.c.bf16 %v466, %v466
  %v562 = vpack.c.bf16 %v469, %v469
  %v563 = vpack.c.bf16 %v471, %v471
  %v564 = vpack.c.bf16 %v474, %v474
  %v565 = vpack.c.bf16 %v476, %v476
  %v566 = vpack.c.bf16 %v479, %v479
  %v567 = vpack.c.bf16 %v481, %v481
  %v568 = vpack.c.bf16 %v484, %v484
  %v569 = vpack.c.bf16 %v486, %v486
  %v570 = vpack.c.bf16 %v489, %v489
  %v571 = vpack.c.bf16 %v491, %v491
  %v572 = vpack.c.bf16 %v494, %v494
  %v573 = vpack.c.bf16 %v496, %v496
  %v574 = vpack.c.bf16 %v499, %v499
  %v575 = vpack.c.bf16 %v501, %v501
  %v576 = vpack.c.bf16 %v504, %v504
  %v577 = vpack.c.bf16 %v506, %v506
  %v578 = vpack.c.bf16 %v509, %v509
  %v579 = vpack.c.bf16 %v511, %v511
  %v580 = vpack.c.bf16 %v514, %v514
  %v581 = vpack.c.bf16 %v516, %v516
  %582 = vst [vmem:[%s2] sm:$0xf] %v518
  %583 = vst [vmem:[%s2 + $0x4] sm:$0xf] %v519
  %584 = vst [vmem:[%s2 + $0x8] sm:$0xf] %v520
  %585 = vst [vmem:[%s2 + $0xc] sm:$0xf] %v521
  %586 = vst [vmem:[%s2 + $0x10] sm:$0xf] %v522
  %587 = vst [vmem:[%s2 + $0x14] sm:$0xf] %v523
  %588 = vst [vmem:[%s2 + $0x18] sm:$0xf] %v524
  %589 = vst [vmem:[%s2 + $0x1c] sm:$0xf] %v525
  %590 = vst [vmem:[%s2 + $0x20] sm:$0xf] %v526
  %591 = vst [vmem:[%s2 + $0x24] sm:$0xf] %v527
  %592 = vst [vmem:[%s2 + $0x28] sm:$0xf] %v528
  %593 = vst [vmem:[%s2 + $0x2c] sm:$0xf] %v529
  %594 = vst [vmem:[%s2 + $0x30] sm:$0xf] %v530
  %595 = vst [vmem:[%s2 + $0x34] sm:$0xf] %v531
  %596 = vst [vmem:[%s2 + $0x38] sm:$0xf] %v532
  %597 = vst [vmem:[%s2 + $0x3c] sm:$0xf] %v533
  %598 = vst [vmem:[%s2 + $0x40] sm:$0xf] %v534
  %599 = vst [vmem:[%s2 + $0x44] sm:$0xf] %v535
  %600 = vst [vmem:[%s2 + $0x48] sm:$0xf] %v536
  %601 = vst [vmem:[%s2 + $0x4c] sm:$0xf] %v537
  %602 = vst [vmem:[%s2 + $0x50] sm:$0xf] %v538
  %603 = vst [vmem:[%s2 + $0x54] sm:$0xf] %v539
  %604 = vst [vmem:[%s2 + $0x58] sm:$0xf] %v540
  %605 = vst [vmem:[%s2 + $0x5c] sm:$0xf] %v541
  %606 = vst [vmem:[%s2 + $0x60] sm:$0xf] %v542
  %607 = vst [vmem:[%s2 + $0x64] sm:$0xf] %v543
  %608 = vst [vmem:[%s2 + $0x68] sm:$0xf] %v544
  %609 = vst [vmem:[%s2 + $0x6c] sm:$0xf] %v545
  %610 = vst [vmem:[%s2 + $0x70] sm:$0xf] %v546
  %611 = vst [vmem:[%s2 + $0x74] sm:$0xf] %v547
  %612 = vst [vmem:[%s2 + $0x78] sm:$0xf] %v548
  %613 = vst [vmem:[%s2 + $0x7c] sm:$0xf] %v549
  %614 = vst [vmem:[%s2 + $0x80] sm:$0xf] %v550
  %615 = vst [vmem:[%s2 + $0x84] sm:$0xf] %v551
  %616 = vst [vmem:[%s2 + $0x88] sm:$0xf] %v552
  %617 = vst [vmem:[%s2 + $0x8c] sm:$0xf] %v553
  %618 = vst [vmem:[%s2 + $0x90] sm:$0xf] %v554
  %619 = vst [vmem:[%s2 + $0x94] sm:$0xf] %v555
  %620 = vst [vmem:[%s2 + $0x98] sm:$0xf] %v556
  %621 = vst [vmem:[%s2 + $0x9c] sm:$0xf] %v557
  %622 = vst [vmem:[%s2 + $0xa0] sm:$0xf] %v558
  %623 = vst [vmem:[%s2 + $0xa4] sm:$0xf] %v559
  %624 = vst [vmem:[%s2 + $0xa8] sm:$0xf] %v560
  %625 = vst [vmem:[%s2 + $0xac] sm:$0xf] %v561
  %626 = vst [vmem:[%s2 + $0xb0] sm:$0xf] %v562
  %627 = vst [vmem:[%s2 + $0xb4] sm:$0xf] %v563
  %628 = vst [vmem:[%s2 + $0xb8] sm:$0xf] %v564
  %629 = vst [vmem:[%s2 + $0xbc] sm:$0xf] %v565
  %630 = vst [vmem:[%s2 + $0xc0] sm:$0xf] %v566
  %631 = vst [vmem:[%s2 + $0xc4] sm:$0xf] %v567
  %632 = vst [vmem:[%s2 + $0xc8] sm:$0xf] %v568
  %633 = vst [vmem:[%s2 + $0xcc] sm:$0xf] %v569
  %634 = vst [vmem:[%s2 + $0xd0] sm:$0xf] %v570
  %635 = vst [vmem:[%s2 + $0xd4] sm:$0xf] %v571
  %636 = vst [vmem:[%s2 + $0xd8] sm:$0xf] %v572
  %637 = vst [vmem:[%s2 + $0xdc] sm:$0xf] %v573
  %638 = vst [vmem:[%s2 + $0xe0] sm:$0xf] %v574
  %639 = vst [vmem:[%s2 + $0xe4] sm:$0xf] %v575
  %640 = vst [vmem:[%s2 + $0xe8] sm:$0xf] %v576
  %641 = vst [vmem:[%s2 + $0xec] sm:$0xf] %v577
  %642 = vst [vmem:[%s2 + $0xf0] sm:$0xf] %v578
  %643 = vst [vmem:[%s2 + $0xf4] sm:$0xf] %v579
  %644 = vst [vmem:[%s2 + $0xf8] sm:$0xf] %v580
  %645 = vst [vmem:[%s2 + $0xfc] sm:$0xf] %v581
  // Predicated region
  $region10: #{_gcn_forward.2} parent=0 // pred_check
    _
  $region11: #{_gcn_forward.2} parent=0 // pred_check_branch
    %647 = sbr.rel (0) target = $region13
  $region12: #{_gcn_forward.2} parent=0 // pred_region
    _
  $region13: #{_gcn_forward.2} parent=0 // pred_fallthru
    _
  // Predicated region
  $region14: #{_gcn_forward.2} parent=0 // pred_check
    _
  $region15: #{_gcn_forward.2} parent=0 // pred_check_branch
    %649 = sbr.rel (0) target = $region17
  $region16: #{_gcn_forward.2} parent=0 // pred_region
    _
  $region17: #{_gcn_forward.2} parent=0 // pred_fallthru
    _

// kernel: _gcn_forward.3
$region0: #{_gcn_forward.3}
  #allocation0 [shape = 'u32[]', space=smem, size = 0x4, offset = 0x4, fixed_abs, tag = 'smem constant byte address 0x4 - core index']
  #allocation1 [shape = 'u32[72,128]{1,0:T(1,128)}', space=vmem, size = 0x9000, scoped, tag = 'internal scratch']
  #allocation2 [shape = 's32[1]{0}', space=sflag, size = 0x4, scoped, tag = 'scoped memory for _gcn_forward.3']
  #allocation3 [shape = 'u8[1024]{0}', space=smem, size = 0x400, scoped, tag = 'prefetched SMEM operand 0']
  #allocation4 [shape = 'u8[512]{0}', space=smem, size = 0x200, scoped, tag = 'prefetched SMEM operand 1']
  %s0 = inlined_call_operand.vmem [shape: s32[2,1], index: 0, kind: input, shape index: {}]
  %s1 = inlined_call_operand.vmem [shape: s32[2], index: 1, kind: input, shape index: {}]
  %s2 = inlined_call_operand.hbm [shape: bf16[512,512], index: 2, kind: input, shape index: {}]
  %s3 = inlined_call_operand.vmem [shape: bf16[512,128], index: 3, kind: input, shape index: {}]
  %s4 = inlined_call_operand.vmem [shape: f32[1,128], index: 4, kind: input, shape index: {}]
  %s5 = inlined_call_operand.vmem [shape: f32[1,128], index: 5, kind: input, shape index: {}]
  %s6 = inlined_call_operand.vmem [shape: f32[512,128], index: 6, kind: output, shape index: {}]
  %s7 = sld [smem:[#allocation0]]
  $region65: #{_gcn_forward.3} parent=0
    _
  %s9 = ssub.s32 1, %s7
  %s10 = scalar_select 0, %s9, %s7
  %s12 = sshll.u32 %s0, 4
  %s13 = int_to_ptr.vmem [resolvable:$true] %s12
  %15 = dma.vmem_to_smem %s13, 32, [#allocation3], [#allocation2]
  %s17 = sshll.u32 %s1, 4
  %s18 = int_to_ptr.vmem [resolvable:$true] %s17
  %20 = dma.vmem_to_smem %s18, 16, [#allocation4], [#allocation2]
  %22 = dma.done [#allocation2], 48
  %23 = sfence
  $region1: #{_gcn_forward.3} parent=0
    #allocation5 [shape = 'u8[524288]{0}', space=vmem, size = 0x80000, scoped, tag = 'input window, operand 2']
    #allocation6 [shape = 's32[2]{0}', space=sflag, size = 0x8, scoped, tag = 'scoped memory for _gcn_forward.3']
    %24 = vsyncpa [#allocation6], 0
    %s25 = scalar_lea.sflag [#allocation6], 1
    %26 = vsyncpa %s25, 0
    loop: start=0, step=1, limit=4
    $region2: #{_gcn_forward.3} parent=1 // loop_pre_header
      _
    $region3: #{_gcn_forward.3} parent=1 // loop_header
      %s28 = sphi 0, %s32
      %p29 = scmp.ge.s32.totalorder %s28, 4
      %s35 = sphi 0, %s47
      %s36 = sphi 0, %s43
      %s37 = sphi 0, %s35
      %s38 = sphi 0, %s36
      %s39 = sphi 0, %s37
      %s40 = sphi 0, %s38
      %s68 = sphi 0, %s70
      %s71 = sphi 0, %s68
      %s72 = sphi 0, %s71
      %s88 = sphi 0, %s72
      %s110 = sphi 0, %s112
      %s113 = sphi 0, %s110
      %s114 = sphi 0, %s113
      %s130 = sphi 0, %s114
      %s134 = sphi 0, %s134
      %s136 = sphi 0, %s134
      %s137 = sphi 0, %s136
      %s151 = sphi 0, %s137
      %s155 = sphi 0, %s155
      %s157 = sphi 0, %s155
      %s158 = sphi 0, %s157
      %s172 = sphi 0, %s158
      %s178 = sphi 0, %s180
      %s181 = sphi 0, %s178
      %s182 = sphi 0, %s181
      %s198 = sphi 0, %s182
    $region4: #{_gcn_forward.3} parent=1 // loop_header_branch
      %31 = sbr.rel (%p29) target = $region8
    $region5: #{_gcn_forward.3} parent=1 // loop_body
      %s33 = ssub.s32 %s28, 1
      %s34 = ssub.s32 %s28, 2
      %s41 = sadd.s32 1, %s36
      %p42 = scmp.ge.s32.totalorder %s41, 1
      %s43 = scalar_select %p42, 0, %s41
      %s44 = sadd.s32 1, %s35
      %s45 = scalar_select %p42, %s44, %s35
      %p46 = scmp.ge.s32.totalorder %s45, 2
      %s47 = scalar_select %p46, 0, %s45
      %s48 = sshra.s32 %s36, 7
      %s49 = sand.u32 %s36, 127
      %s50 = sadd.s32 %s48, %s35
      %s51 = smul.u32 %s50, 128
      %s52 = sshra.s32 %s36, 7
      %s53 = sand.u32 %s36, 127
      %s54 = sadd.s32 %s51, %s53
      %s55 = sld [smem:[#allocation3 + %s54]]
      %s56 = sshra.s32 %s43, 7
      %s57 = sand.u32 %s43, 127
      %s58 = sadd.s32 %s56, %s47
      %s59 = smul.u32 %s58, 128
      %s60 = sshra.s32 %s43, 7
      %s61 = sand.u32 %s43, 127
      %s62 = sadd.s32 %s59, %s61
      %s63 = sld [smem:[#allocation3 + %s62]]
      %s64 = ssub.s32 %s35, %s47
      %s65 = ssub.s32 %s55, %s63
      %s66 = sor.u32 %s64, %s65
      %p67 = scmp.eq.s32.totalorder %s66, 0
      %s69 = sadd.s32 %s68, 1
      %s70 = scalar_select %p67, %s68, %s69
      %p73 = pneg %p67
      %p74 = scmp.eq.s32.totalorder %s28, 1
      %p75 = por %p73, %p74
      %p76 = scmp.ne.s32.totalorder %s68, %s71
      %p77 = scmp.eq.s32.totalorder %s28, 0
      %p78 = por %p76, %p77
      %p79 = scmp.ne.s32.totalorder %s68, %s71
      %p80 = scmp.eq.s32.totalorder %s33, 1
      %p81 = por %p79, %p80
      %p82 = scmp.ne.s32.totalorder %s71, %s72
      %p83 = scmp.eq.s32.totalorder %s33, 0
      %p84 = por %p82, %p83
      %p85 = scmp.ne.s32.totalorder %s71, %s72
      %p86 = scmp.eq.s32.totalorder %s34, 1
      %p87 = por %p85, %p86
      %p89 = scmp.ne.s32.totalorder %s72, %s88
      %p90 = scmp.eq.s32.totalorder %s34, 0
      %p91 = por %p89, %p90
      %s92 = sshra.s32 %s36, 7
      %s93 = sand.u32 %s36, 127
      %s94 = sadd.s32 %s92, %s35
      %s95 = smul.u32 %s94, 128
      %s96 = sshra.s32 %s36, 7
      %s97 = sand.u32 %s36, 127
      %s98 = sadd.s32 %s95, %s97
      %s99 = sld [smem:[#allocation3 + %s98]]
      %s100 = sshra.s32 %s43, 7
      %s101 = sand.u32 %s43, 127
      %s102 = sadd.s32 %s100, %s47
      %s103 = smul.u32 %s102, 128
      %s104 = sshra.s32 %s43, 7
      %s105 = sand.u32 %s43, 127
      %s106 = sadd.s32 %s103, %s105
      %s107 = sld [smem:[#allocation3 + %s106]]
      %s108 = ssub.s32 %s99, %s107
      %p109 = scmp.eq.s32.totalorder %s108, 0
      %s111 = sadd.s32 %s110, 1
      %s112 = scalar_select %p109, %s110, %s111
      %p115 = pneg %p109
      %p116 = scmp.eq.s32.totalorder %s28, 1
      %p117 = por %p115, %p116
      %p118 = scmp.ne.s32.totalorder %s110, %s113
      %p119 = scmp.eq.s32.totalorder %s28, 0
      %p120 = por %p118, %p119
      %p121 = scmp.ne.s32.totalorder %s110, %s113
      %p122 = scmp.eq.s32.totalorder %s33, 1
      %p123 = por %p121, %p122
      %p124 = scmp.ne.s32.totalorder %s113, %s114
      %p125 = scmp.eq.s32.totalorder %s33, 0
      %p126 = por %p124, %p125
      %p127 = scmp.ne.s32.totalorder %s113, %s114
      %p128 = scmp.eq.s32.totalorder %s34, 1
      %p129 = por %p127, %p128
      %p131 = scmp.ne.s32.totalorder %s114, %s130
      %p132 = scmp.eq.s32.totalorder %s34, 0
      %p133 = por %p131, %p132
      %s135 = sadd.s32 %s134, 1
      %p138 = scmp.eq.s32.totalorder %s28, 1
      %p139 = scmp.ne.s32.totalorder %s134, %s136
      %p140 = scmp.eq.s32.totalorder %s28, 0
      %p141 = por %p139, %p140
      %p142 = scmp.ne.s32.totalorder %s134, %s136
      %p143 = scmp.eq.s32.totalorder %s33, 1
      %p144 = por %p142, %p143
      %p145 = scmp.ne.s32.totalorder %s136, %s137
      %p146 = scmp.eq.s32.totalorder %s33, 0
      %p147 = por %p145, %p146
      %p148 = scmp.ne.s32.totalorder %s136, %s137
      %p149 = scmp.eq.s32.totalorder %s34, 1
      %p150 = por %p148, %p149
      %p152 = scmp.ne.s32.totalorder %s137, %s151
      %p153 = scmp.eq.s32.totalorder %s34, 0
      %p154 = por %p152, %p153
      %s156 = sadd.s32 %s155, 1
      %p159 = scmp.eq.s32.totalorder %s28, 1
      %p160 = scmp.ne.s32.totalorder %s155, %s157
      %p161 = scmp.eq.s32.totalorder %s28, 0
      %p162 = por %p160, %p161
      %p163 = scmp.ne.s32.totalorder %s155, %s157
      %p164 = scmp.eq.s32.totalorder %s33, 1
      %p165 = por %p163, %p164
      %p166 = scmp.ne.s32.totalorder %s157, %s158
      %p167 = scmp.eq.s32.totalorder %s33, 0
      %p168 = por %p166, %p167
      %p169 = scmp.ne.s32.totalorder %s157, %s158
      %p170 = scmp.eq.s32.totalorder %s34, 1
      %p171 = por %p169, %p170
      %p173 = scmp.ne.s32.totalorder %s158, %s172
      %p174 = scmp.eq.s32.totalorder %s34, 0
      %p175 = por %p173, %p174
      %s176 = ssub.s32 %s35, %s47
      %p177 = scmp.eq.s32.totalorder %s176, 0
      %s179 = sadd.s32 %s178, 1
      %s180 = scalar_select %p177, %s178, %s179
      %p183 = pneg %p177
      %p184 = scmp.eq.s32.totalorder %s28, 1
      %p185 = por %p183, %p184
      %p186 = scmp.ne.s32.totalorder %s178, %s181
      %p187 = scmp.eq.s32.totalorder %s28, 0
      %p188 = por %p186, %p187
      %p189 = scmp.ne.s32.totalorder %s178, %s181
      %p190 = scmp.eq.s32.totalorder %s33, 1
      %p191 = por %p189, %p190
      %p192 = scmp.ne.s32.totalorder %s181, %s182
      %p193 = scmp.eq.s32.totalorder %s33, 0
      %p194 = por %p192, %p193
      %p195 = scmp.ne.s32.totalorder %s181, %s182
      %p196 = scmp.eq.s32.totalorder %s34, 1
      %p197 = por %p195, %p196
      %p199 = scmp.ne.s32.totalorder %s182, %s198
      %p200 = scmp.eq.s32.totalorder %s34, 0
      %p201 = por %p199, %p200
      %p202 = scmp.le.s32.totalorder 1, %s28
      %p203 = scmp.lt.s32.totalorder %s28, 3
      %p204 = pnand %p202, %p203
      %p205 = pneg %p204
      // Predicated region
      $region9: #{_gcn_forward.3} parent=5 // pred_check
        _
      $region10: #{_gcn_forward.3} parent=5 // pred_check_branch
        %207 = sbr.rel (%p204) target = $region12
      $region11: #{_gcn_forward.3} parent=5 // pred_region
        %s208 = ssub.s32 %s28, 1
        // Predicated region
        $region13: #{_gcn_forward.3} parent=11 // pred_check
          %p209 = pneg %p147
        $region14: #{_gcn_forward.3} parent=11 // pred_check_branch
          %211 = sbr.rel (%p209) target = $region16
        $region15: #{_gcn_forward.3} parent=11 // pred_region
          _
        $region16: #{_gcn_forward.3} parent=11 // pred_fallthru
          _
        // Predicated region
        $region17: #{_gcn_forward.3} parent=11 // pred_check
          %p212 = pneg %p168
        $region18: #{_gcn_forward.3} parent=11 // pred_check_branch
          %214 = sbr.rel (%p212) target = $region20
        $region19: #{_gcn_forward.3} parent=11 // pred_region
          _
        $region20: #{_gcn_forward.3} parent=11 // pred_fallthru
          _
      $region12: #{_gcn_forward.3} parent=5 // pred_fallthru
        _
      %p215 = scmp.lt.s32.totalorder %s28, 2
      // Predicated region
      $region21: #{_gcn_forward.3} parent=5 // pred_check
        %p216 = pneg %p215
      $region22: #{_gcn_forward.3} parent=5 // pred_check_branch
        %218 = sbr.rel (%p216) target = $region24
      $region23: #{_gcn_forward.3} parent=5 // pred_region
        // Predicated region
        $region25: #{_gcn_forward.3} parent=23 // pred_check
          %p219 = pneg %p78
        $region26: #{_gcn_forward.3} parent=23 // pred_check_branch
          %221 = sbr.rel (%p219) target = $region28
        $region27: #{_gcn_forward.3} parent=23 // pred_region
          %s222 = sand.u32 %s68, 1
          %s223 = scalar_lea.sflag [#allocation6], %s222
          %s224 = sand.u32 %s68, 1
          %s225 = smul.addr %s224, 512
          %s226 = scalar_lea.vmem [#allocation5], %s225
          %s227 = sshra.s32 %s36, 7
          %s228 = sand.u32 %s36, 127
          %s229 = sadd.s32 %s227, %s35
          %s230 = smul.u32 %s229, 128
          %s231 = sshra.s32 %s36, 7
          %s232 = sand.u32 %s36, 127
          %s233 = sadd.s32 %s230, %s232
          %s234 = sld [smem:[#allocation3 + %s233]]
          %s235 = smul.u32 32, %s35
          %s236 = smul.u32 4, %s234
          %238 = vsyncadd %s223, 0
          %s239 = smul.addr %s235, 4
          %s240 = sadd.s32 %s236, %s239
          %s241 = smul.addr %s240, 4
          %s242 = scalar_lea.hbm %s2, %s241
          %s243 = sshll.u32 %s242, 4
          %s244 = int_to_ptr.hbm [resolvable:$true] %s243
          %s245 = sshll.u32 %s226, 4
          %s246 = int_to_ptr.vmem [resolvable:$true] %s245
          %251 = dma.hbm_to_vmem [thread:$0]  %s244, 8192, %s246, %s223, 256, 256, 16
        $region28: #{_gcn_forward.3} parent=23 // pred_fallthru
          _
        // Predicated region
        $region29: #{_gcn_forward.3} parent=23 // pred_check
          %p252 = pneg %p120
        $region30: #{_gcn_forward.3} parent=23 // pred_check_branch
          %254 = sbr.rel (%p252) target = $region32
        $region31: #{_gcn_forward.3} parent=23 // pred_region
          %s255 = sshra.s32 %s36, 7
          %s256 = sand.u32 %s36, 127
          %s257 = sadd.s32 %s255, %s35
          %s258 = smul.u32 %s257, 128
          %s259 = sshra.s32 %s36, 7
          %s260 = sand.u32 %s36, 127
          %s261 = sadd.s32 %s258, %s260
          %s262 = sld [smem:[#allocation3 + %s261]]
          %s263 = smul.u32 64, %s262
          %p264 = scmp.lt.s32.totalorder %s263, 63
          %s265 = scalar_select %p264, %s263, 63
          %s266 = smul.addr %s265, 4
          %s267 = scalar_lea.vmem %s3, %s266
          %s268 = sshra.s32 %s36, 7
          %s269 = sand.u32 %s36, 127
          %s270 = sadd.s32 %s268, %s35
          %s271 = smul.u32 %s270, 128
          %s272 = sshra.s32 %s36, 7
          %s273 = sand.u32 %s36, 127
          %s274 = sadd.s32 %s271, %s273
          %s275 = sld [smem:[#allocation3 + %s274]]
          %s276 = smul.u32 64, %s275
        $region32: #{_gcn_forward.3} parent=23 // pred_fallthru
          _
      $region24: #{_gcn_forward.3} parent=5 // pred_fallthru
        _
      %p277 = scmp.le.s32.totalorder 1, %s28
      %p278 = scmp.lt.s32.totalorder %s28, 3
      %p279 = pnand %p277, %p278
      %p280 = pneg %p279
      // Predicated region
      $region33: #{_gcn_forward.3} parent=5 // pred_check
        _
      $region34: #{_gcn_forward.3} parent=5 // pred_check_branch
        %282 = sbr.rel (%p279) target = $region36
      $region35: #{_gcn_forward.3} parent=5 // pred_region
        %s283 = ssub.s32 %s28, 1
        %s284 = sand.u32 %s71, 1
        %s285 = scalar_lea.sflag [#allocation6], %s284
        %s286 = sand.u32 %s71, 1
        %s287 = smul.addr %s286, 512
        %s288 = scalar_lea.vmem [#allocation5], %s287
        // Predicated region
        $region37: #{_gcn_forward.3} parent=35 // pred_check
          %p289 = pneg %p84
        $region38: #{_gcn_forward.3} parent=35 // pred_check_branch
          %291 = sbr.rel (%p289) target = $region40
        $region39: #{_gcn_forward.3} parent=35 // pred_region
          %293 = dma.done %s285, 8192
        $region40: #{_gcn_forward.3} parent=35 // pred_fallthru
          _
        %s294 = sand.u32 %s71, 1
        %s295 = scalar_lea.sflag [#allocation6], %s294
        %s296 = sand.u32 %s71, 1
        %s297 = smul.addr %s296, 512
        %s298 = scalar_lea.vmem [#allocation5], %s297
        %p299 = pneg %p84
        %p300 = pneg %p81
        %s301 = sshra.s32 %s38, 7
        %s302 = sand.u32 %s38, 127
        %s303 = sadd.s32 %s301, %s37
        %s304 = smul.u32 %s303, 128
        %s305 = sshra.s32 %s38, 7
        %s306 = sand.u32 %s38, 127
        %s307 = sadd.s32 %s304, %s306
        %s308 = sld [smem:[#allocation3 + %s307]]
        %s309 = smul.u32 64, %s308
        %p310 = scmp.lt.s32.totalorder %s309, 63
        %s311 = scalar_select %p310, %s309, 63
        %s312 = smul.addr %s311, 4
        %s313 = scalar_lea.vmem %s3, %s312
        %p314 = pneg %p126
        %p315 = pneg %p123
        %p316 = pneg %p147
        %p317 = pneg %p144
        %p318 = pneg %p168
        %p319 = pneg %p165
        %p320 = pneg %p194
        %p321 = pneg %p191
        %s322 = smul.u32 32, %s37
        %p323 = scmp.lt.s32.totalorder %s322, 63
        %s324 = scalar_select %p323, %s322, 63
        %s325 = smul.addr %s324, 8
        %s326 = scalar_lea.vmem %s6, %s325
        %s327 = sshra.s32 %s38, 7
        %s328 = sand.u32 %s38, 127
        %s329 = sadd.s32 %s327, %s37
        %s330 = smul.u32 %s329, 128
        %s331 = sshra.s32 %s38, 7
        %s332 = sand.u32 %s38, 127
        %s333 = sadd.s32 %s330, %s332
        %s334 = sld [smem:[#allocation3 + %s333]]
        %s335 = smul.u32 32, %s37
        %s336 = smul.u32 4, %s334
        %s337 = sshra.s32 %s38, 7
        %s338 = sand.u32 %s38, 127
        %s339 = sadd.s32 %s337, %s37
        %s340 = smul.u32 %s339, 128
        %s341 = sshra.s32 %s38, 7
        %s342 = sand.u32 %s38, 127
        %s343 = sadd.s32 %s340, %s342
        %s344 = sld [smem:[#allocation3 + %s343]]
        %s345 = smul.u32 64, %s344
        %p346 = scmp.lt.s32.totalorder %s345, 63
        %s347 = scalar_select %p346, %s345, 63
        %s348 = smul.addr %s347, 4
        %s349 = scalar_lea.vmem %s3, %s348
        %s350 = sshra.s32 %s38, 7
        %s351 = sand.u32 %s38, 127
        %s352 = sadd.s32 %s350, %s37
        %s353 = smul.u32 %s352, 128
        %s354 = sshra.s32 %s38, 7
        %s355 = sand.u32 %s38, 127
        %s356 = sadd.s32 %s353, %s355
        %s357 = sld [smem:[#allocation3 + %s356]]
        %s358 = smul.u32 64, %s357
        %s359 = smul.u32 32, %s37
        %p360 = scmp.lt.s32.totalorder %s359, 63
        %s361 = scalar_select %p360, %s359, 63
        %s362 = smul.addr %s361, 8
        %s363 = scalar_lea.vmem %s6, %s362
        %s364 = smul.u32 32, %s37
        %p365 = scmp.eq.s32.totalorder %s38, 0
        // Predicated region
        $region41: #{_gcn_forward.3} parent=35 // pred_check
          %p366 = pneg %p365
        $region42: #{_gcn_forward.3} parent=35 // pred_check_branch
          %368 = sbr.rel (%p366) target = $region44
        $region43: #{_gcn_forward.3} parent=35 // pred_region
          %v369 = vld [vmem:[%s4] sm:$0x1]
          %v371 = vperm.slane %v369, 0
          %373 = vst [vmem:[%s363] sm:$0xff] %v371
          %374 = vst [vmem:[%s363 + $0x8] sm:$0xff] %v371
          %375 = vst [vmem:[%s363 + $0x10] sm:$0xff] %v371
          %376 = vst [vmem:[%s363 + $0x18] sm:$0xff] %v371
          %377 = vst [vmem:[%s363 + $0x20] sm:$0xff] %v371
          %378 = vst [vmem:[%s363 + $0x28] sm:$0xff] %v371
          %379 = vst [vmem:[%s363 + $0x30] sm:$0xff] %v371
          %380 = vst [vmem:[%s363 + $0x38] sm:$0xff] %v371
          %381 = vst [vmem:[%s363 + $0x40] sm:$0xff] %v371
          %382 = vst [vmem:[%s363 + $0x48] sm:$0xff] %v371
          %383 = vst [vmem:[%s363 + $0x50] sm:$0xff] %v371
          %384 = vst [vmem:[%s363 + $0x58] sm:$0xff] %v371
          %385 = vst [vmem:[%s363 + $0x60] sm:$0xff] %v371
          %386 = vst [vmem:[%s363 + $0x68] sm:$0xff] %v371
          %387 = vst [vmem:[%s363 + $0x70] sm:$0xff] %v371
          %388 = vst [vmem:[%s363 + $0x78] sm:$0xff] %v371
          %389 = vst [vmem:[%s363 + $0x80] sm:$0xff] %v371
          %390 = vst [vmem:[%s363 + $0x88] sm:$0xff] %v371
          %391 = vst [vmem:[%s363 + $0x90] sm:$0xff] %v371
          %392 = vst [vmem:[%s363 + $0x98] sm:$0xff] %v371
          %393 = vst [vmem:[%s363 + $0xa0] sm:$0xff] %v371
          %394 = vst [vmem:[%s363 + $0xa8] sm:$0xff] %v371
          %395 = vst [vmem:[%s363 + $0xb0] sm:$0xff] %v371
          %396 = vst [vmem:[%s363 + $0xb8] sm:$0xff] %v371
          %397 = vst [vmem:[%s363 + $0xc0] sm:$0xff] %v371
          %398 = vst [vmem:[%s363 + $0xc8] sm:$0xff] %v371
          %399 = vst [vmem:[%s363 + $0xd0] sm:$0xff] %v371
          %400 = vst [vmem:[%s363 + $0xd8] sm:$0xff] %v371
          %401 = vst [vmem:[%s363 + $0xe0] sm:$0xff] %v371
          %402 = vst [vmem:[%s363 + $0xe8] sm:$0xff] %v371
          %403 = vst [vmem:[%s363 + $0xf0] sm:$0xff] %v371
          %404 = vst [vmem:[%s363 + $0xf8] sm:$0xff] %v371
        $region44: #{_gcn_forward.3} parent=35 // pred_fallthru
          _
        %s405 = sld [smem:[#allocation4 + %s37]]
        %p406 = scmp.lt.s32.totalorder %s38, %s405
        // Predicated region
        $region45: #{_gcn_forward.3} parent=35 // pred_check
          %p407 = pneg %p406
        $region46: #{_gcn_forward.3} parent=35 // pred_check_branch
          %409 = sbr.rel (%p407) target = $region48
        $region47: #{_gcn_forward.3} parent=35 // pred_region
          %v410 = vld [vmem:[%s363] sm:$0xff]
          %v411 = vld [vmem:[%s363 + $0x8] sm:$0xff]
          %v412 = vld [vmem:[%s363 + $0x10] sm:$0xff]
          %v413 = vld [vmem:[%s363 + $0x18] sm:$0xff]
          %v414 = vld [vmem:[%s363 + $0x20] sm:$0xff]
          %v415 = vld [vmem:[%s363 + $0x28] sm:$0xff]
          %v416 = vld [vmem:[%s363 + $0x30] sm:$0xff]
          %v417 = vld [vmem:[%s363 + $0x38] sm:$0xff]
          %v418 = vld [vmem:[%s363 + $0x40] sm:$0xff]
          %v419 = vld [vmem:[%s363 + $0x48] sm:$0xff]
          %v420 = vld [vmem:[%s363 + $0x50] sm:$0xff]
          %v421 = vld [vmem:[%s363 + $0x58] sm:$0xff]
          %v422 = vld [vmem:[%s363 + $0x60] sm:$0xff]
          %v423 = vld [vmem:[%s363 + $0x68] sm:$0xff]
          %v424 = vld [vmem:[%s363 + $0x70] sm:$0xff]
          %v425 = vld [vmem:[%s363 + $0x78] sm:$0xff]
          %v426 = vld [vmem:[%s363 + $0x80] sm:$0xff]
          %v427 = vld [vmem:[%s363 + $0x88] sm:$0xff]
          %v428 = vld [vmem:[%s363 + $0x90] sm:$0xff]
          %v429 = vld [vmem:[%s363 + $0x98] sm:$0xff]
          %v430 = vld [vmem:[%s363 + $0xa0] sm:$0xff]
          %v431 = vld [vmem:[%s363 + $0xa8] sm:$0xff]
          %v432 = vld [vmem:[%s363 + $0xb0] sm:$0xff]
          %v433 = vld [vmem:[%s363 + $0xb8] sm:$0xff]
          %v434 = vld [vmem:[%s363 + $0xc0] sm:$0xff]
          %v435 = vld [vmem:[%s363 + $0xc8] sm:$0xff]
          %v436 = vld [vmem:[%s363 + $0xd0] sm:$0xff]
          %v437 = vld [vmem:[%s363 + $0xd8] sm:$0xff]
          %v438 = vld [vmem:[%s363 + $0xe0] sm:$0xff]
          %v439 = vld [vmem:[%s363 + $0xe8] sm:$0xff]
          %v440 = vld [vmem:[%s363 + $0xf0] sm:$0xff]
          %v441 = vld [vmem:[%s363 + $0xf8] sm:$0xff]
          %v442 = vld [vmem:[%s288] sm:$0xff]
          %v443 = vld [vmem:[%s288 + $0x8] sm:$0xff]
          %v444 = vld [vmem:[%s288 + $0x10] sm:$0xff]
          %v445 = vld [vmem:[%s288 + $0x18] sm:$0xff]
          %v446 = vld [vmem:[%s288 + $0x20] sm:$0xff]
          %v447 = vld [vmem:[%s288 + $0x28] sm:$0xff]
          %v448 = vld [vmem:[%s288 + $0x30] sm:$0xff]
          %v449 = vld [vmem:[%s288 + $0x38] sm:$0xff]
          %v450 = vld [vmem:[%s288 + $0x40] sm:$0xff]
          %v451 = vld [vmem:[%s288 + $0x48] sm:$0xff]
          %v452 = vld [vmem:[%s288 + $0x50] sm:$0xff]
          %v453 = vld [vmem:[%s288 + $0x58] sm:$0xff]
          %v454 = vld [vmem:[%s288 + $0x60] sm:$0xff]
          %v455 = vld [vmem:[%s288 + $0x68] sm:$0xff]
          %v456 = vld [vmem:[%s288 + $0x70] sm:$0xff]
          %v457 = vld [vmem:[%s288 + $0x78] sm:$0xff]
          %v458 = vld [vmem:[%s288 + $0x80] sm:$0xff]
          %v459 = vld [vmem:[%s288 + $0x88] sm:$0xff]
          %v460 = vld [vmem:[%s288 + $0x90] sm:$0xff]
          %v461 = vld [vmem:[%s288 + $0x98] sm:$0xff]
          %v462 = vld [vmem:[%s288 + $0xa0] sm:$0xff]
          %v463 = vld [vmem:[%s288 + $0xa8] sm:$0xff]
          %v464 = vld [vmem:[%s288 + $0xb0] sm:$0xff]
          %v465 = vld [vmem:[%s288 + $0xb8] sm:$0xff]
          %v466 = vld [vmem:[%s288 + $0xc0] sm:$0xff]
          %v467 = vld [vmem:[%s288 + $0xc8] sm:$0xff]
          %v468 = vld [vmem:[%s288 + $0xd0] sm:$0xff]
          %v469 = vld [vmem:[%s288 + $0xd8] sm:$0xff]
          %v470 = vld [vmem:[%s288 + $0xe0] sm:$0xff]
          %v471 = vld [vmem:[%s288 + $0xe8] sm:$0xff]
          %v472 = vld [vmem:[%s288 + $0xf0] sm:$0xff]
          %v473 = vld [vmem:[%s288 + $0xf8] sm:$0xff]
          %v474 = vld [vmem:[%s288 + $0x100] sm:$0xff]
          %v475 = vld [vmem:[%s288 + $0x108] sm:$0xff]
          %v476 = vld [vmem:[%s288 + $0x110] sm:$0xff]
          %v477 = vld [vmem:[%s288 + $0x118] sm:$0xff]
          %v478 = vld [vmem:[%s288 + $0x120] sm:$0xff]
          %v479 = vld [vmem:[%s288 + $0x128] sm:$0xff]
          %v480 = vld [vmem:[%s288 + $0x130] sm:$0xff]
          %v481 = vld [vmem:[%s288 + $0x138] sm:$0xff]
          %v482 = vld [vmem:[%s288 + $0x140] sm:$0xff]
          %v483 = vld [vmem:[%s288 + $0x148] sm:$0xff]
          %v484 = vld [vmem:[%s288 + $0x150] sm:$0xff]
          %v485 = vld [vmem:[%s288 + $0x158] sm:$0xff]
          %v486 = vld [vmem:[%s288 + $0x160] sm:$0xff]
          %v487 = vld [vmem:[%s288 + $0x168] sm:$0xff]
          %v488 = vld [vmem:[%s288 + $0x170] sm:$0xff]
          %v489 = vld [vmem:[%s288 + $0x178] sm:$0xff]
          %v490 = vld [vmem:[%s288 + $0x180] sm:$0xff]
          %v491 = vld [vmem:[%s288 + $0x188] sm:$0xff]
          %v492 = vld [vmem:[%s288 + $0x190] sm:$0xff]
          %v493 = vld [vmem:[%s288 + $0x198] sm:$0xff]
          %v494 = vld [vmem:[%s288 + $0x1a0] sm:$0xff]
          %v495 = vld [vmem:[%s288 + $0x1a8] sm:$0xff]
          %v496 = vld [vmem:[%s288 + $0x1b0] sm:$0xff]
          %v497 = vld [vmem:[%s288 + $0x1b8] sm:$0xff]
          %v498 = vld [vmem:[%s288 + $0x1c0] sm:$0xff]
          %v499 = vld [vmem:[%s288 + $0x1c8] sm:$0xff]
          %v500 = vld [vmem:[%s288 + $0x1d0] sm:$0xff]
          %v501 = vld [vmem:[%s288 + $0x1d8] sm:$0xff]
          %v502 = vld [vmem:[%s288 + $0x1e0] sm:$0xff]
          %v503 = vld [vmem:[%s288 + $0x1e8] sm:$0xff]
          %v504 = vld [vmem:[%s288 + $0x1f0] sm:$0xff]
          %v505 = vld [vmem:[%s288 + $0x1f8] sm:$0xff]
          %v506 = vld [vmem:[%s349] sm:$0xf]
          %v507 = vld [vmem:[%s349 + $0x4] sm:$0xf]
          %v508 = vld [vmem:[%s349 + $0x8] sm:$0xf]
          %v509 = vld [vmem:[%s349 + $0xc] sm:$0xf]
          %v510 = vld [vmem:[%s349 + $0x10] sm:$0xf]
          %v511 = vld [vmem:[%s349 + $0x14] sm:$0xf]
          %v512 = vld [vmem:[%s349 + $0x18] sm:$0xf]
          %v513 = vld [vmem:[%s349 + $0x1c] sm:$0xf]
          %v514 = vld [vmem:[%s349 + $0x20] sm:$0xf]
          %v515 = vld [vmem:[%s349 + $0x24] sm:$0xf]
          %v516 = vld [vmem:[%s349 + $0x28] sm:$0xf]
          %v517 = vld [vmem:[%s349 + $0x2c] sm:$0xf]
          %v518 = vld [vmem:[%s349 + $0x30] sm:$0xf]
          %v519 = vld [vmem:[%s349 + $0x34] sm:$0xf]
          %v520 = vld [vmem:[%s349 + $0x38] sm:$0xf]
          %v521 = vld [vmem:[%s349 + $0x3c] sm:$0xf]
          %v522 = vld [vmem:[%s349 + $0x40] sm:$0xf]
          %v523 = vld [vmem:[%s349 + $0x44] sm:$0xf]
          %v524 = vld [vmem:[%s349 + $0x48] sm:$0xf]
          %v525 = vld [vmem:[%s349 + $0x4c] sm:$0xf]
          %v526 = vld [vmem:[%s349 + $0x50] sm:$0xf]
          %v527 = vld [vmem:[%s349 + $0x54] sm:$0xf]
          %v528 = vld [vmem:[%s349 + $0x58] sm:$0xf]
          %v529 = vld [vmem:[%s349 + $0x5c] sm:$0xf]
          %v530 = vld [vmem:[%s349 + $0x60] sm:$0xf]
          %v531 = vld [vmem:[%s349 + $0x64] sm:$0xf]
          %v532 = vld [vmem:[%s349 + $0x68] sm:$0xf]
          %v533 = vld [vmem:[%s349 + $0x6c] sm:$0xf]
          %v534 = vld [vmem:[%s349 + $0x70] sm:$0xf]
          %v535 = vld [vmem:[%s349 + $0x74] sm:$0xf]
          %v536 = vld [vmem:[%s349 + $0x78] sm:$0xf]
          %v537 = vld [vmem:[%s349 + $0x7c] sm:$0xf]
          %v538 = vld [vmem:[%s349 + $0x80] sm:$0xf]
          %v539 = vld [vmem:[%s349 + $0x84] sm:$0xf]
          %v540 = vld [vmem:[%s349 + $0x88] sm:$0xf]
          %v541 = vld [vmem:[%s349 + $0x8c] sm:$0xf]
          %v542 = vld [vmem:[%s349 + $0x90] sm:$0xf]
          %v543 = vld [vmem:[%s349 + $0x94] sm:$0xf]
          %v544 = vld [vmem:[%s349 + $0x98] sm:$0xf]
          %v545 = vld [vmem:[%s349 + $0x9c] sm:$0xf]
          %v546 = vld [vmem:[%s349 + $0xa0] sm:$0xf]
          %v547 = vld [vmem:[%s349 + $0xa4] sm:$0xf]
          %v548 = vld [vmem:[%s349 + $0xa8] sm:$0xf]
          %v549 = vld [vmem:[%s349 + $0xac] sm:$0xf]
          %v550 = vld [vmem:[%s349 + $0xb0] sm:$0xf]
          %v551 = vld [vmem:[%s349 + $0xb4] sm:$0xf]
          %v552 = vld [vmem:[%s349 + $0xb8] sm:$0xf]
          %v553 = vld [vmem:[%s349 + $0xbc] sm:$0xf]
          %v554 = vld [vmem:[%s349 + $0xc0] sm:$0xf]
          %v555 = vld [vmem:[%s349 + $0xc4] sm:$0xf]
          %v556 = vld [vmem:[%s349 + $0xc8] sm:$0xf]
          %v557 = vld [vmem:[%s349 + $0xcc] sm:$0xf]
          %v558 = vld [vmem:[%s349 + $0xd0] sm:$0xf]
          %v559 = vld [vmem:[%s349 + $0xd4] sm:$0xf]
          %v560 = vld [vmem:[%s349 + $0xd8] sm:$0xf]
          %v561 = vld [vmem:[%s349 + $0xdc] sm:$0xf]
          %v562 = vld [vmem:[%s349 + $0xe0] sm:$0xf]
          %v563 = vld [vmem:[%s349 + $0xe4] sm:$0xf]
          %v564 = vld [vmem:[%s349 + $0xe8] sm:$0xf]
          %v565 = vld [vmem:[%s349 + $0xec] sm:$0xf]
          %v566 = vld [vmem:[%s349 + $0xf0] sm:$0xf]
          %v567 = vld [vmem:[%s349 + $0xf4] sm:$0xf]
          %v568 = vld [vmem:[%s349 + $0xf8] sm:$0xf]
          %v569 = vld [vmem:[%s349 + $0xfc] sm:$0xf]
          %v634 = vunpack.c.l.b16 %v442
          %v635 = vunpack.c.h.b16 %v442
          %v636 = vunpack.c.l.b16 %v443
          %v637 = vunpack.c.h.b16 %v443
          %v638 = vunpack.c.l.b16 %v444
          %v639 = vunpack.c.h.b16 %v444
          %v640 = vunpack.c.l.b16 %v445
          %v641 = vunpack.c.h.b16 %v445
          %v642 = vunpack.c.l.b16 %v446
          %v643 = vunpack.c.h.b16 %v446
          %v644 = vunpack.c.l.b16 %v447
          %v645 = vunpack.c.h.b16 %v447
          %v646 = vunpack.c.l.b16 %v448
          %v647 = vunpack.c.h.b16 %v448
          %v648 = vunpack.c.l.b16 %v449
          %v649 = vunpack.c.h.b16 %v449
          %v650 = vunpack.c.l.b16 %v450
          %v651 = vunpack.c.h.b16 %v450
          %v652 = vunpack.c.l.b16 %v451
          %v653 = vunpack.c.h.b16 %v451
          %v654 = vunpack.c.l.b16 %v452
          %v655 = vunpack.c.h.b16 %v452
          %v656 = vunpack.c.l.b16 %v453
          %v657 = vunpack.c.h.b16 %v453
          %v658 = vunpack.c.l.b16 %v454
          %v659 = vunpack.c.h.b16 %v454
          %v660 = vunpack.c.l.b16 %v455
          %v661 = vunpack.c.h.b16 %v455
          %v662 = vunpack.c.l.b16 %v456
          %v663 = vunpack.c.h.b16 %v456
          %v664 = vunpack.c.l.b16 %v457
          %v665 = vunpack.c.h.b16 %v457
          %v666 = vunpack.c.l.b16 %v458
          %v667 = vunpack.c.h.b16 %v458
          %v668 = vunpack.c.l.b16 %v459
          %v669 = vunpack.c.h.b16 %v459
          %v670 = vunpack.c.l.b16 %v460
          %v671 = vunpack.c.h.b16 %v460
          %v672 = vunpack.c.l.b16 %v461
          %v673 = vunpack.c.h.b16 %v461
          %v674 = vunpack.c.l.b16 %v462
          %v675 = vunpack.c.h.b16 %v462
          %v676 = vunpack.c.l.b16 %v463
          %v677 = vunpack.c.h.b16 %v463
          %v678 = vunpack.c.l.b16 %v464
          %v679 = vunpack.c.h.b16 %v464
          %v680 = vunpack.c.l.b16 %v465
          %v681 = vunpack.c.h.b16 %v465
          %v682 = vunpack.c.l.b16 %v466
          %v683 = vunpack.c.h.b16 %v466
          %v684 = vunpack.c.l.b16 %v467
          %v685 = vunpack.c.h.b16 %v467
          %v686 = vunpack.c.l.b16 %v468
          %v687 = vunpack.c.h.b16 %v468
          %v688 = vunpack.c.l.b16 %v469
          %v689 = vunpack.c.h.b16 %v469
          %v690 = vunpack.c.l.b16 %v470
          %v691 = vunpack.c.h.b16 %v470
          %v692 = vunpack.c.l.b16 %v471
          %v693 = vunpack.c.h.b16 %v471
          %v694 = vunpack.c.l.b16 %v472
          %v695 = vunpack.c.h.b16 %v472
          %v696 = vunpack.c.l.b16 %v473
          %v697 = vunpack.c.h.b16 %v473
          %v698 = vunpack.c.l.b16 %v474
          %v699 = vunpack.c.h.b16 %v474
          %v700 = vunpack.c.l.b16 %v475
          %v701 = vunpack.c.h.b16 %v475
          %v702 = vunpack.c.l.b16 %v476
          %v703 = vunpack.c.h.b16 %v476
          %v704 = vunpack.c.l.b16 %v477
          %v705 = vunpack.c.h.b16 %v477
          %v706 = vunpack.c.l.b16 %v478
          %v707 = vunpack.c.h.b16 %v478
          %v708 = vunpack.c.l.b16 %v479
          %v709 = vunpack.c.h.b16 %v479
          %v710 = vunpack.c.l.b16 %v480
          %v711 = vunpack.c.h.b16 %v480
          %v712 = vunpack.c.l.b16 %v481
          %v713 = vunpack.c.h.b16 %v481
          %v714 = vunpack.c.l.b16 %v482
          %v715 = vunpack.c.h.b16 %v482
          %v716 = vunpack.c.l.b16 %v483
          %v717 = vunpack.c.h.b16 %v483
          %v718 = vunpack.c.l.b16 %v484
          %v719 = vunpack.c.h.b16 %v484
          %v720 = vunpack.c.l.b16 %v485
          %v721 = vunpack.c.h.b16 %v485
          %v722 = vunpack.c.l.b16 %v486
          %v723 = vunpack.c.h.b16 %v486
          %v724 = vunpack.c.l.b16 %v487
          %v725 = vunpack.c.h.b16 %v487
          %v726 = vunpack.c.l.b16 %v488
          %v727 = vunpack.c.h.b16 %v488
          %v728 = vunpack.c.l.b16 %v489
          %v729 = vunpack.c.h.b16 %v489
          %v730 = vunpack.c.l.b16 %v490
          %v731 = vunpack.c.h.b16 %v490
          %v732 = vunpack.c.l.b16 %v491
          %v733 = vunpack.c.h.b16 %v491
          %v734 = vunpack.c.l.b16 %v492
          %v735 = vunpack.c.h.b16 %v492
          %v736 = vunpack.c.l.b16 %v493
          %v737 = vunpack.c.h.b16 %v493
          %v738 = vunpack.c.l.b16 %v494
          %v739 = vunpack.c.h.b16 %v494
          %v740 = vunpack.c.l.b16 %v495
          %v741 = vunpack.c.h.b16 %v495
          %v742 = vunpack.c.l.b16 %v496
          %v743 = vunpack.c.h.b16 %v496
          %v744 = vunpack.c.l.b16 %v497
          %v745 = vunpack.c.h.b16 %v497
          %v746 = vunpack.c.l.b16 %v498
          %v747 = vunpack.c.h.b16 %v498
          %v748 = vunpack.c.l.b16 %v499
          %v749 = vunpack.c.h.b16 %v499
          %v750 = vunpack.c.l.b16 %v500
          %v751 = vunpack.c.h.b16 %v500
          %v752 = vunpack.c.l.b16 %v501
          %v753 = vunpack.c.h.b16 %v501
          %v754 = vunpack.c.l.b16 %v502
          %v755 = vunpack.c.h.b16 %v502
          %v756 = vunpack.c.l.b16 %v503
          %v757 = vunpack.c.h.b16 %v503
          %v758 = vunpack.c.l.b16 %v504
          %v759 = vunpack.c.h.b16 %v504
          %v760 = vunpack.c.l.b16 %v505
          %v761 = vunpack.c.h.b16 %v505
          %v762 = vpack.c.b16 %v638, %v634
          %v763 = vpack.c.b16 %v639, %v635
          %v764 = vpack.c.b16 %v640, %v636
          %v765 = vpack.c.b16 %v641, %v637
          %v766 = vpack.c.b16 %v646, %v642
          %v767 = vpack.c.b16 %v647, %v643
          %v768 = vpack.c.b16 %v648, %v644
          %v769 = vpack.c.b16 %v649, %v645
          %v770 = vpack.c.b16 %v654, %v650
          %v771 = vpack.c.b16 %v655, %v651
          %v772 = vpack.c.b16 %v656, %v652
          %v773 = vpack.c.b16 %v657, %v653
          %v774 = vpack.c.b16 %v662, %v658
          %v775 = vpack.c.b16 %v663, %v659
          %v776 = vpack.c.b16 %v664, %v660
          %v777 = vpack.c.b16 %v665, %v661
          %v778 = vpack.c.b16 %v670, %v666
          %v779 = vpack.c.b16 %v671, %v667
          %v780 = vpack.c.b16 %v672, %v668
          %v781 = vpack.c.b16 %v673, %v669
          %v782 = vpack.c.b16 %v678, %v674
          %v783 = vpack.c.b16 %v679, %v675
          %v784 = vpack.c.b16 %v680, %v676
          %v785 = vpack.c.b16 %v681, %v677
          %v786 = vpack.c.b16 %v686, %v682
          %v787 = vpack.c.b16 %v687, %v683
          %v788 = vpack.c.b16 %v688, %v684
          %v789 = vpack.c.b16 %v689, %v685
          %v790 = vpack.c.b16 %v694, %v690
          %v791 = vpack.c.b16 %v695, %v691
          %v792 = vpack.c.b16 %v696, %v692
          %v793 = vpack.c.b16 %v697, %v693
          %v794 = vpack.c.b16 %v702, %v698
          %v795 = vpack.c.b16 %v703, %v699
          %v796 = vpack.c.b16 %v704, %v700
          %v797 = vpack.c.b16 %v705, %v701
          %v798 = vpack.c.b16 %v710, %v706
          %v799 = vpack.c.b16 %v711, %v707
          %v800 = vpack.c.b16 %v712, %v708
          %v801 = vpack.c.b16 %v713, %v709
          %v802 = vpack.c.b16 %v718, %v714
          %v803 = vpack.c.b16 %v719, %v715
          %v804 = vpack.c.b16 %v720, %v716
          %v805 = vpack.c.b16 %v721, %v717
          %v806 = vpack.c.b16 %v726, %v722
          %v807 = vpack.c.b16 %v727, %v723
          %v808 = vpack.c.b16 %v728, %v724
          %v809 = vpack.c.b16 %v729, %v725
          %v810 = vpack.c.b16 %v734, %v730
          %v811 = vpack.c.b16 %v735, %v731
          %v812 = vpack.c.b16 %v736, %v732
          %v813 = vpack.c.b16 %v737, %v733
          %v814 = vpack.c.b16 %v742, %v738
          %v815 = vpack.c.b16 %v743, %v739
          %v816 = vpack.c.b16 %v744, %v740
          %v817 = vpack.c.b16 %v745, %v741
          %v818 = vpack.c.b16 %v750, %v746
          %v819 = vpack.c.b16 %v751, %v747
          %v820 = vpack.c.b16 %v752, %v748
          %v821 = vpack.c.b16 %v753, %v749
          %v822 = vpack.c.b16 %v758, %v754
          %v823 = vpack.c.b16 %v759, %v755
          %v824 = vpack.c.b16 %v760, %v756
          %v825 = vpack.c.b16 %v761, %v757
          %v954 = vunpack.c.l.b16 %v506
          %v955 = vunpack.c.l.b16 %v507
          %v956 = vunpack.c.l.b16 %v508
          %v957 = vunpack.c.l.b16 %v509
          %v958 = vunpack.c.l.b16 %v510
          %v959 = vunpack.c.l.b16 %v511
          %v960 = vunpack.c.l.b16 %v512
          %v961 = vunpack.c.l.b16 %v513
          %v962 = vunpack.c.l.b16 %v514
          %v963 = vunpack.c.l.b16 %v515
          %v964 = vunpack.c.l.b16 %v516
          %v965 = vunpack.c.l.b16 %v517
          %v966 = vunpack.c.l.b16 %v518
          %v967 = vunpack.c.l.b16 %v519
          %v968 = vunpack.c.l.b16 %v520
          %v969 = vunpack.c.l.b16 %v521
          %v970 = vunpack.c.l.b16 %v522
          %v971 = vunpack.c.l.b16 %v523
          %v972 = vunpack.c.l.b16 %v524
          %v973 = vunpack.c.l.b16 %v525
          %v974 = vunpack.c.l.b16 %v526
          %v975 = vunpack.c.l.b16 %v527
          %v976 = vunpack.c.l.b16 %v528
          %v977 = vunpack.c.l.b16 %v529
          %v978 = vunpack.c.l.b16 %v530
          %v979 = vunpack.c.l.b16 %v531
          %v980 = vunpack.c.l.b16 %v532
          %v981 = vunpack.c.l.b16 %v533
          %v982 = vunpack.c.l.b16 %v534
          %v983 = vunpack.c.l.b16 %v535
          %v984 = vunpack.c.l.b16 %v536
          %v985 = vunpack.c.l.b16 %v537
          %v986 = vunpack.c.l.b16 %v538
          %v987 = vunpack.c.l.b16 %v539
          %v988 = vunpack.c.l.b16 %v540
          %v989 = vunpack.c.l.b16 %v541
          %v990 = vunpack.c.l.b16 %v542
          %v991 = vunpack.c.l.b16 %v543
          %v992 = vunpack.c.l.b16 %v544
          %v993 = vunpack.c.l.b16 %v545
          %v994 = vunpack.c.l.b16 %v546
          %v995 = vunpack.c.l.b16 %v547
          %v996 = vunpack.c.l.b16 %v548
          %v997 = vunpack.c.l.b16 %v549
          %v998 = vunpack.c.l.b16 %v550
          %v999 = vunpack.c.l.b16 %v551
          %v1000 = vunpack.c.l.b16 %v552
          %v1001 = vunpack.c.l.b16 %v553
          %v1002 = vunpack.c.l.b16 %v554
          %v1003 = vunpack.c.l.b16 %v555
          %v1004 = vunpack.c.l.b16 %v556
          %v1005 = vunpack.c.l.b16 %v557
          %v1006 = vunpack.c.l.b16 %v558
          %v1007 = vunpack.c.l.b16 %v559
          %v1008 = vunpack.c.l.b16 %v560
          %v1009 = vunpack.c.l.b16 %v561
          %v1010 = vunpack.c.l.b16 %v562
          %v1011 = vunpack.c.l.b16 %v563
          %v1012 = vunpack.c.l.b16 %v564
          %v1013 = vunpack.c.l.b16 %v565
          %v1014 = vunpack.c.l.b16 %v566
          %v1015 = vunpack.c.l.b16 %v567
          %v1016 = vunpack.c.l.b16 %v568
          %v1017 = vunpack.c.l.b16 %v569
          %v1018 = vpack.c.b16 %v955, %v954
          %v1019 = vpack.c.b16 %v957, %v956
          %v1020 = vpack.c.b16 %v959, %v958
          %v1021 = vpack.c.b16 %v961, %v960
          %v1022 = vpack.c.b16 %v963, %v962
          %v1023 = vpack.c.b16 %v965, %v964
          %v1024 = vpack.c.b16 %v967, %v966
          %v1025 = vpack.c.b16 %v969, %v968
          %v1026 = vpack.c.b16 %v971, %v970
          %v1027 = vpack.c.b16 %v973, %v972
          %v1028 = vpack.c.b16 %v975, %v974
          %v1029 = vpack.c.b16 %v977, %v976
          %v1030 = vpack.c.b16 %v979, %v978
          %v1031 = vpack.c.b16 %v981, %v980
          %v1032 = vpack.c.b16 %v983, %v982
          %v1033 = vpack.c.b16 %v985, %v984
          %v1034 = vpack.c.b16 %v987, %v986
          %v1035 = vpack.c.b16 %v989, %v988
          %v1036 = vpack.c.b16 %v991, %v990
          %v1037 = vpack.c.b16 %v993, %v992
          %v1038 = vpack.c.b16 %v995, %v994
          %v1039 = vpack.c.b16 %v997, %v996
          %v1040 = vpack.c.b16 %v999, %v998
          %v1041 = vpack.c.b16 %v1001, %v1000
          %v1042 = vpack.c.b16 %v1003, %v1002
          %v1043 = vpack.c.b16 %v1005, %v1004
          %v1044 = vpack.c.b16 %v1007, %v1006
          %v1045 = vpack.c.b16 %v1009, %v1008
          %v1046 = vpack.c.b16 %v1011, %v1010
          %v1047 = vpack.c.b16 %v1013, %v1012
          %v1048 = vpack.c.b16 %v1015, %v1014
          %v1049 = vpack.c.b16 %v1017, %v1016
          %1082 = vmatpush.bf16.msra.mxu0 %v1025
          %1083 = vmatpush.bf16.msra.mxu0 %v1024
          %1084 = vmatpush.bf16.msra.mxu0 %v1023
          %1085 = vmatpush.bf16.msra.mxu0 %v1022
          %1086 = vmatpush.bf16.msra.mxu0 %v1021
          %1087 = vmatpush.bf16.msra.mxu0 %v1020
          %1088 = vmatpush.bf16.msra.mxu0 %v1019
          %1089 = vmatpush.bf16.msra.mxu0 %v1018
          %1090 = vmatmul.bf16.gmra.mxu0 %v762
          %v1091 = vpop.f32.mrf.mxu0
          %v1092 = vadd.f32 0.0, %v1091
          %v1093 = vpop.f32.mrf.mxu0
          %v1094 = vadd.f32 0.0, %v1093
          %1095 = vmatmul.bf16.gmra.mxu0 %v766
          %v1096 = vpop.f32.mrf.mxu0
          %v1097 = vadd.f32 0.0, %v1096
          %v1098 = vpop.f32.mrf.mxu0
          %v1099 = vadd.f32 0.0, %v1098
          %1100 = vmatmul.bf16.gmra.mxu0 %v770
          %v1101 = vpop.f32.mrf.mxu0
          %v1102 = vadd.f32 0.0, %v1101
          %v1103 = vpop.f32.mrf.mxu0
          %v1104 = vadd.f32 0.0, %v1103
          %1105 = vmatmul.bf16.gmra.mxu0 %v774
          %v1106 = vpop.f32.mrf.mxu0
          %v1107 = vadd.f32 0.0, %v1106
          %v1108 = vpop.f32.mrf.mxu0
          %v1109 = vadd.f32 0.0, %v1108
          %1110 = vmatmul.bf16.gmra.mxu0 %v778
          %v1111 = vpop.f32.mrf.mxu0
          %v1112 = vadd.f32 0.0, %v1111
          %v1113 = vpop.f32.mrf.mxu0
          %v1114 = vadd.f32 0.0, %v1113
          %1115 = vmatmul.bf16.gmra.mxu0 %v782
          %v1116 = vpop.f32.mrf.mxu0
          %v1117 = vadd.f32 0.0, %v1116
          %v1118 = vpop.f32.mrf.mxu0
          %v1119 = vadd.f32 0.0, %v1118
          %1120 = vmatmul.bf16.gmra.mxu0 %v786
          %v1121 = vpop.f32.mrf.mxu0
          %v1122 = vadd.f32 0.0, %v1121
          %v1123 = vpop.f32.mrf.mxu0
          %v1124 = vadd.f32 0.0, %v1123
          %1125 = vmatmul.bf16.gmra.mxu0 %v790
          %v1126 = vpop.f32.mrf.mxu0
          %v1127 = vadd.f32 0.0, %v1126
          %v1128 = vpop.f32.mrf.mxu0
          %v1129 = vadd.f32 0.0, %v1128
          %1130 = vmatmul.bf16.gmra.mxu0 %v794
          %v1131 = vpop.f32.mrf.mxu0
          %v1132 = vadd.f32 0.0, %v1131
          %v1133 = vpop.f32.mrf.mxu0
          %v1134 = vadd.f32 0.0, %v1133
          %1135 = vmatmul.bf16.gmra.mxu0 %v798
          %v1136 = vpop.f32.mrf.mxu0
          %v1137 = vadd.f32 0.0, %v1136
          %v1138 = vpop.f32.mrf.mxu0
          %v1139 = vadd.f32 0.0, %v1138
          %1140 = vmatmul.bf16.gmra.mxu0 %v802
          %v1141 = vpop.f32.mrf.mxu0
          %v1142 = vadd.f32 0.0, %v1141
          %v1143 = vpop.f32.mrf.mxu0
          %v1144 = vadd.f32 0.0, %v1143
          %1145 = vmatmul.bf16.gmra.mxu0 %v806
          %v1146 = vpop.f32.mrf.mxu0
          %v1147 = vadd.f32 0.0, %v1146
          %v1148 = vpop.f32.mrf.mxu0
          %v1149 = vadd.f32 0.0, %v1148
          %1150 = vmatmul.bf16.gmra.mxu0 %v810
          %v1151 = vpop.f32.mrf.mxu0
          %v1152 = vadd.f32 0.0, %v1151
          %v1153 = vpop.f32.mrf.mxu0
          %v1154 = vadd.f32 0.0, %v1153
          %1155 = vmatmul.bf16.gmra.mxu0 %v814
          %v1156 = vpop.f32.mrf.mxu0
          %v1157 = vadd.f32 0.0, %v1156
          %v1158 = vpop.f32.mrf.mxu0
          %v1159 = vadd.f32 0.0, %v1158
          %1160 = vmatmul.bf16.gmra.mxu0 %v818
          %v1161 = vpop.f32.mrf.mxu0
          %v1162 = vadd.f32 0.0, %v1161
          %v1163 = vpop.f32.mrf.mxu0
          %v1164 = vadd.f32 0.0, %v1163
          %1165 = vmatmul.bf16.gmra.mxu0 %v822
          %v1166 = vpop.f32.mrf.mxu0
          %v1167 = vadd.f32 0.0, %v1166
          %v1168 = vpop.f32.mrf.mxu0
          %v1169 = vadd.f32 0.0, %v1168
          %1170 = vdwg.mxu0
          %1171 = vmatpush.bf16.msra.mxu0 %v1033
          %1172 = vmatpush.bf16.msra.mxu0 %v1032
          %1173 = vmatpush.bf16.msra.mxu0 %v1031
          %1174 = vmatpush.bf16.msra.mxu0 %v1030
          %1175 = vmatpush.bf16.msra.mxu0 %v1029
          %1176 = vmatpush.bf16.msra.mxu0 %v1028
          %1177 = vmatpush.bf16.msra.mxu0 %v1027
          %1178 = vmatpush.bf16.msra.mxu0 %v1026
          %1179 = vmatmul.bf16.gmra.mxu0 %v763
          %v1180 = vpop.f32.mrf.mxu0
          %v1181 = vadd.f32 %v1092, %v1180
          %v1182 = vpop.f32.mrf.mxu0
          %v1183 = vadd.f32 %v1094, %v1182
          %1184 = vmatmul.bf16.gmra.mxu0 %v767
          %v1185 = vpop.f32.mrf.mxu0
          %v1186 = vadd.f32 %v1097, %v1185
          %v1187 = vpop.f32.mrf.mxu0
          %v1188 = vadd.f32 %v1099, %v1187
          %1189 = vmatmul.bf16.gmra.mxu0 %v771
          %v1190 = vpop.f32.mrf.mxu0
          %v1191 = vadd.f32 %v1102, %v1190
          %v1192 = vpop.f32.mrf.mxu0
          %v1193 = vadd.f32 %v1104, %v1192
          %1194 = vmatmul.bf16.gmra.mxu0 %v775
          %v1195 = vpop.f32.mrf.mxu0
          %v1196 = vadd.f32 %v1107, %v1195
          %v1197 = vpop.f32.mrf.mxu0
          %v1198 = vadd.f32 %v1109, %v1197
          %1199 = vmatmul.bf16.gmra.mxu0 %v779
          %v1200 = vpop.f32.mrf.mxu0
          %v1201 = vadd.f32 %v1112, %v1200
          %v1202 = vpop.f32.mrf.mxu0
          %v1203 = vadd.f32 %v1114, %v1202
          %1204 = vmatmul.bf16.gmra.mxu0 %v783
          %v1205 = vpop.f32.mrf.mxu0
          %v1206 = vadd.f32 %v1117, %v1205
          %v1207 = vpop.f32.mrf.mxu0
          %v1208 = vadd.f32 %v1119, %v1207
          %1209 = vmatmul.bf16.gmra.mxu0 %v787
          %v1210 = vpop.f32.mrf.mxu0
          %v1211 = vadd.f32 %v1122, %v1210
          %v1212 = vpop.f32.mrf.mxu0
          %v1213 = vadd.f32 %v1124, %v1212
          %1214 = vmatmul.bf16.gmra.mxu0 %v791
          %v1215 = vpop.f32.mrf.mxu0
          %v1216 = vadd.f32 %v1127, %v1215
          %v1217 = vpop.f32.mrf.mxu0
          %v1218 = vadd.f32 %v1129, %v1217
          %1219 = vmatmul.bf16.gmra.mxu0 %v795
          %v1220 = vpop.f32.mrf.mxu0
          %v1221 = vadd.f32 %v1132, %v1220
          %v1222 = vpop.f32.mrf.mxu0
          %v1223 = vadd.f32 %v1134, %v1222
          %1224 = vmatmul.bf16.gmra.mxu0 %v799
          %v1225 = vpop.f32.mrf.mxu0
          %v1226 = vadd.f32 %v1137, %v1225
          %v1227 = vpop.f32.mrf.mxu0
          %v1228 = vadd.f32 %v1139, %v1227
          %1229 = vmatmul.bf16.gmra.mxu0 %v803
          %v1230 = vpop.f32.mrf.mxu0
          %v1231 = vadd.f32 %v1142, %v1230
          %v1232 = vpop.f32.mrf.mxu0
          %v1233 = vadd.f32 %v1144, %v1232
          %1234 = vmatmul.bf16.gmra.mxu0 %v807
          %v1235 = vpop.f32.mrf.mxu0
          %v1236 = vadd.f32 %v1147, %v1235
          %v1237 = vpop.f32.mrf.mxu0
          %v1238 = vadd.f32 %v1149, %v1237
          %1239 = vmatmul.bf16.gmra.mxu0 %v811
          %v1240 = vpop.f32.mrf.mxu0
          %v1241 = vadd.f32 %v1152, %v1240
          %v1242 = vpop.f32.mrf.mxu0
          %v1243 = vadd.f32 %v1154, %v1242
          %1244 = vmatmul.bf16.gmra.mxu0 %v815
          %v1245 = vpop.f32.mrf.mxu0
          %v1246 = vadd.f32 %v1157, %v1245
          %v1247 = vpop.f32.mrf.mxu0
          %v1248 = vadd.f32 %v1159, %v1247
          %1249 = vmatmul.bf16.gmra.mxu0 %v819
          %v1250 = vpop.f32.mrf.mxu0
          %v1251 = vadd.f32 %v1162, %v1250
          %v1252 = vpop.f32.mrf.mxu0
          %v1253 = vadd.f32 %v1164, %v1252
          %1254 = vmatmul.bf16.gmra.mxu0 %v823
          %v1255 = vpop.f32.mrf.mxu0
          %v1256 = vadd.f32 %v1167, %v1255
          %v1257 = vpop.f32.mrf.mxu0
          %v1258 = vadd.f32 %v1169, %v1257
          %1259 = vdwg.mxu0
          %1260 = vmatpush.bf16.msra.mxu0 %v1041
          %1261 = vmatpush.bf16.msra.mxu0 %v1040
          %1262 = vmatpush.bf16.msra.mxu0 %v1039
          %1263 = vmatpush.bf16.msra.mxu0 %v1038
          %1264 = vmatpush.bf16.msra.mxu0 %v1037
          %1265 = vmatpush.bf16.msra.mxu0 %v1036
          %1266 = vmatpush.bf16.msra.mxu0 %v1035
          %1267 = vmatpush.bf16.msra.mxu0 %v1034
          %1268 = vmatmul.bf16.gmra.mxu0 %v764
          %v1269 = vpop.f32.mrf.mxu0
          %v1270 = vadd.f32 %v1181, %v1269
          %v1271 = vpop.f32.mrf.mxu0
          %v1272 = vadd.f32 %v1183, %v1271
          %1273 = vmatmul.bf16.gmra.mxu0 %v768
          %v1274 = vpop.f32.mrf.mxu0
          %v1275 = vadd.f32 %v1186, %v1274
          %v1276 = vpop.f32.mrf.mxu0
          %v1277 = vadd.f32 %v1188, %v1276
          %1278 = vmatmul.bf16.gmra.mxu0 %v772
          %v1279 = vpop.f32.mrf.mxu0
          %v1280 = vadd.f32 %v1191, %v1279
          %v1281 = vpop.f32.mrf.mxu0
          %v1282 = vadd.f32 %v1193, %v1281
          %1283 = vmatmul.bf16.gmra.mxu0 %v776
          %v1284 = vpop.f32.mrf.mxu0
          %v1285 = vadd.f32 %v1196, %v1284
          %v1286 = vpop.f32.mrf.mxu0
          %v1287 = vadd.f32 %v1198, %v1286
          %1288 = vmatmul.bf16.gmra.mxu0 %v780
          %v1289 = vpop.f32.mrf.mxu0
          %v1290 = vadd.f32 %v1201, %v1289
          %v1291 = vpop.f32.mrf.mxu0
          %v1292 = vadd.f32 %v1203, %v1291
          %1293 = vmatmul.bf16.gmra.mxu0 %v784
          %v1294 = vpop.f32.mrf.mxu0
          %v1295 = vadd.f32 %v1206, %v1294
          %v1296 = vpop.f32.mrf.mxu0
          %v1297 = vadd.f32 %v1208, %v1296
          %1298 = vmatmul.bf16.gmra.mxu0 %v788
          %v1299 = vpop.f32.mrf.mxu0
          %v1300 = vadd.f32 %v1211, %v1299
          %v1301 = vpop.f32.mrf.mxu0
          %v1302 = vadd.f32 %v1213, %v1301
          %1303 = vmatmul.bf16.gmra.mxu0 %v792
          %v1304 = vpop.f32.mrf.mxu0
          %v1305 = vadd.f32 %v1216, %v1304
          %v1306 = vpop.f32.mrf.mxu0
          %v1307 = vadd.f32 %v1218, %v1306
          %1308 = vmatmul.bf16.gmra.mxu0 %v796
          %v1309 = vpop.f32.mrf.mxu0
          %v1310 = vadd.f32 %v1221, %v1309
          %v1311 = vpop.f32.mrf.mxu0
          %v1312 = vadd.f32 %v1223, %v1311
          %1313 = vmatmul.bf16.gmra.mxu0 %v800
          %v1314 = vpop.f32.mrf.mxu0
          %v1315 = vadd.f32 %v1226, %v1314
          %v1316 = vpop.f32.mrf.mxu0
          %v1317 = vadd.f32 %v1228, %v1316
          %1318 = vmatmul.bf16.gmra.mxu0 %v804
          %v1319 = vpop.f32.mrf.mxu0
          %v1320 = vadd.f32 %v1231, %v1319
          %v1321 = vpop.f32.mrf.mxu0
          %v1322 = vadd.f32 %v1233, %v1321
          %1323 = vmatmul.bf16.gmra.mxu0 %v808
          %v1324 = vpop.f32.mrf.mxu0
          %v1325 = vadd.f32 %v1236, %v1324
          %v1326 = vpop.f32.mrf.mxu0
          %v1327 = vadd.f32 %v1238, %v1326
          %1328 = vmatmul.bf16.gmra.mxu0 %v812
          %v1329 = vpop.f32.mrf.mxu0
          %v1330 = vadd.f32 %v1241, %v1329
          %v1331 = vpop.f32.mrf.mxu0
          %v1332 = vadd.f32 %v1243, %v1331
          %1333 = vmatmul.bf16.gmra.mxu0 %v816
          %v1334 = vpop.f32.mrf.mxu0
          %v1335 = vadd.f32 %v1246, %v1334
          %v1336 = vpop.f32.mrf.mxu0
          %v1337 = vadd.f32 %v1248, %v1336
          %1338 = vmatmul.bf16.gmra.mxu0 %v820
          %v1339 = vpop.f32.mrf.mxu0
          %v1340 = vadd.f32 %v1251, %v1339
          %v1341 = vpop.f32.mrf.mxu0
          %v1342 = vadd.f32 %v1253, %v1341
          %1343 = vmatmul.bf16.gmra.mxu0 %v824
          %v1344 = vpop.f32.mrf.mxu0
          %v1345 = vadd.f32 %v1256, %v1344
          %v1346 = vpop.f32.mrf.mxu0
          %v1347 = vadd.f32 %v1258, %v1346
          %1348 = vdwg.mxu0
          %1349 = vmatpush.bf16.msra.mxu0 %v1049
          %1350 = vmatpush.bf16.msra.mxu0 %v1048
          %1351 = vmatpush.bf16.msra.mxu0 %v1047
          %1352 = vmatpush.bf16.msra.mxu0 %v1046
          %1353 = vmatpush.bf16.msra.mxu0 %v1045
          %1354 = vmatpush.bf16.msra.mxu0 %v1044
          %1355 = vmatpush.bf16.msra.mxu0 %v1043
          %1356 = vmatpush.bf16.msra.mxu0 %v1042
          %1357 = vmatmul.bf16.gmra.mxu0 %v765
          %v1358 = vpop.f32.mrf.mxu0
          %v1359 = vadd.f32 %v1270, %v1358
          %v1360 = vpop.f32.mrf.mxu0
          %v1361 = vadd.f32 %v1272, %v1360
          %1362 = vmatmul.bf16.gmra.mxu0 %v769
          %v1363 = vpop.f32.mrf.mxu0
          %v1364 = vadd.f32 %v1275, %v1363
          %v1365 = vpop.f32.mrf.mxu0
          %v1366 = vadd.f32 %v1277, %v1365
          %1367 = vmatmul.bf16.gmra.mxu0 %v773
          %v1368 = vpop.f32.mrf.mxu0
          %v1369 = vadd.f32 %v1280, %v1368
          %v1370 = vpop.f32.mrf.mxu0
          %v1371 = vadd.f32 %v1282, %v1370
          %1372 = vmatmul.bf16.gmra.mxu0 %v777
          %v1373 = vpop.f32.mrf.mxu0
          %v1374 = vadd.f32 %v1285, %v1373
          %v1375 = vpop.f32.mrf.mxu0
          %v1376 = vadd.f32 %v1287, %v1375
          %1377 = vmatmul.bf16.gmra.mxu0 %v781
          %v1378 = vpop.f32.mrf.mxu0
          %v1379 = vadd.f32 %v1290, %v1378
          %v1380 = vpop.f32.mrf.mxu0
          %v1381 = vadd.f32 %v1292, %v1380
          %1382 = vmatmul.bf16.gmra.mxu0 %v785
          %v1383 = vpop.f32.mrf.mxu0
          %v1384 = vadd.f32 %v1295, %v1383
          %v1385 = vpop.f32.mrf.mxu0
          %v1386 = vadd.f32 %v1297, %v1385
          %1387 = vmatmul.bf16.gmra.mxu0 %v789
          %v1388 = vpop.f32.mrf.mxu0
          %v1389 = vadd.f32 %v1300, %v1388
          %v1390 = vpop.f32.mrf.mxu0
          %v1391 = vadd.f32 %v1302, %v1390
          %1392 = vmatmul.bf16.gmra.mxu0 %v793
          %v1393 = vpop.f32.mrf.mxu0
          %v1394 = vadd.f32 %v1305, %v1393
          %v1395 = vpop.f32.mrf.mxu0
          %v1396 = vadd.f32 %v1307, %v1395
          %1397 = vmatmul.bf16.gmra.mxu0 %v797
          %v1398 = vpop.f32.mrf.mxu0
          %v1399 = vadd.f32 %v1310, %v1398
          %v1400 = vpop.f32.mrf.mxu0
          %v1401 = vadd.f32 %v1312, %v1400
          %1402 = vmatmul.bf16.gmra.mxu0 %v801
          %v1403 = vpop.f32.mrf.mxu0
          %v1404 = vadd.f32 %v1315, %v1403
          %v1405 = vpop.f32.mrf.mxu0
          %v1406 = vadd.f32 %v1317, %v1405
          %1407 = vmatmul.bf16.gmra.mxu0 %v805
          %v1408 = vpop.f32.mrf.mxu0
          %v1409 = vadd.f32 %v1320, %v1408
          %v1410 = vpop.f32.mrf.mxu0
          %v1411 = vadd.f32 %v1322, %v1410
          %1412 = vmatmul.bf16.gmra.mxu0 %v809
          %v1413 = vpop.f32.mrf.mxu0
          %v1414 = vadd.f32 %v1325, %v1413
          %v1415 = vpop.f32.mrf.mxu0
          %v1416 = vadd.f32 %v1327, %v1415
          %1417 = vmatmul.bf16.gmra.mxu0 %v813
          %v1418 = vpop.f32.mrf.mxu0
          %v1419 = vadd.f32 %v1330, %v1418
          %v1420 = vpop.f32.mrf.mxu0
          %v1421 = vadd.f32 %v1332, %v1420
          %1422 = vmatmul.bf16.gmra.mxu0 %v817
          %v1423 = vpop.f32.mrf.mxu0
          %v1424 = vadd.f32 %v1335, %v1423
          %v1425 = vpop.f32.mrf.mxu0
          %v1426 = vadd.f32 %v1337, %v1425
          %1427 = vmatmul.bf16.gmra.mxu0 %v821
          %v1428 = vpop.f32.mrf.mxu0
          %v1429 = vadd.f32 %v1340, %v1428
          %v1430 = vpop.f32.mrf.mxu0
          %v1431 = vadd.f32 %v1342, %v1430
          %1432 = vmatmul.bf16.gmra.mxu0 %v825
          %v1433 = vpop.f32.mrf.mxu0
          %v1434 = vadd.f32 %v1345, %v1433
          %v1435 = vpop.f32.mrf.mxu0
          %v1436 = vadd.f32 %v1347, %v1435
          %1437 = vdwg.mxu0
          %v1438 = vadd.f32 %v410, %v1359
          %v1439 = vadd.f32 %v411, %v1361
          %v1440 = vadd.f32 %v412, %v1364
          %v1441 = vadd.f32 %v413, %v1366
          %v1442 = vadd.f32 %v414, %v1369
          %v1443 = vadd.f32 %v415, %v1371
          %v1444 = vadd.f32 %v416, %v1374
          %v1445 = vadd.f32 %v417, %v1376
          %v1446 = vadd.f32 %v418, %v1379
          %v1447 = vadd.f32 %v419, %v1381
          %v1448 = vadd.f32 %v420, %v1384
          %v1449 = vadd.f32 %v421, %v1386
          %v1450 = vadd.f32 %v422, %v1389
          %v1451 = vadd.f32 %v423, %v1391
          %v1452 = vadd.f32 %v424, %v1394
          %v1453 = vadd.f32 %v425, %v1396
          %v1454 = vadd.f32 %v426, %v1399
          %v1455 = vadd.f32 %v427, %v1401
          %v1456 = vadd.f32 %v428, %v1404
          %v1457 = vadd.f32 %v429, %v1406
          %v1458 = vadd.f32 %v430, %v1409
          %v1459 = vadd.f32 %v431, %v1411
          %v1460 = vadd.f32 %v432, %v1414
          %v1461 = vadd.f32 %v433, %v1416
          %v1462 = vadd.f32 %v434, %v1419
          %v1463 = vadd.f32 %v435, %v1421
          %v1464 = vadd.f32 %v436, %v1424
          %v1465 = vadd.f32 %v437, %v1426
          %v1466 = vadd.f32 %v438, %v1429
          %v1467 = vadd.f32 %v439, %v1431
          %v1468 = vadd.f32 %v440, %v1434
          %v1469 = vadd.f32 %v441, %v1436
          %1470 = vst [vmem:[%s363] sm:$0xff] %v1438
          %1471 = vst [vmem:[%s363 + $0x8] sm:$0xff] %v1439
          %1472 = vst [vmem:[%s363 + $0x10] sm:$0xff] %v1440
          %1473 = vst [vmem:[%s363 + $0x18] sm:$0xff] %v1441
          %1474 = vst [vmem:[%s363 + $0x20] sm:$0xff] %v1442
          %1475 = vst [vmem:[%s363 + $0x28] sm:$0xff] %v1443
          %1476 = vst [vmem:[%s363 + $0x30] sm:$0xff] %v1444
          %1477 = vst [vmem:[%s363 + $0x38] sm:$0xff] %v1445
          %1478 = vst [vmem:[%s363 + $0x40] sm:$0xff] %v1446
          %1479 = vst [vmem:[%s363 + $0x48] sm:$0xff] %v1447
          %1480 = vst [vmem:[%s363 + $0x50] sm:$0xff] %v1448
          %1481 = vst [vmem:[%s363 + $0x58] sm:$0xff] %v1449
          %1482 = vst [vmem:[%s363 + $0x60] sm:$0xff] %v1450
          %1483 = vst [vmem:[%s363 + $0x68] sm:$0xff] %v1451
          %1484 = vst [vmem:[%s363 + $0x70] sm:$0xff] %v1452
          %1485 = vst [vmem:[%s363 + $0x78] sm:$0xff] %v1453
          %1486 = vst [vmem:[%s363 + $0x80] sm:$0xff] %v1454
          %1487 = vst [vmem:[%s363 + $0x88] sm:$0xff] %v1455
          %1488 = vst [vmem:[%s363 + $0x90] sm:$0xff] %v1456
          %1489 = vst [vmem:[%s363 + $0x98] sm:$0xff] %v1457
          %1490 = vst [vmem:[%s363 + $0xa0] sm:$0xff] %v1458
          %1491 = vst [vmem:[%s363 + $0xa8] sm:$0xff] %v1459
          %1492 = vst [vmem:[%s363 + $0xb0] sm:$0xff] %v1460
          %1493 = vst [vmem:[%s363 + $0xb8] sm:$0xff] %v1461
          %1494 = vst [vmem:[%s363 + $0xc0] sm:$0xff] %v1462
          %1495 = vst [vmem:[%s363 + $0xc8] sm:$0xff] %v1463
          %1496 = vst [vmem:[%s363 + $0xd0] sm:$0xff] %v1464
          %1497 = vst [vmem:[%s363 + $0xd8] sm:$0xff] %v1465
          %1498 = vst [vmem:[%s363 + $0xe0] sm:$0xff] %v1466
          %1499 = vst [vmem:[%s363 + $0xe8] sm:$0xff] %v1467
          %1500 = vst [vmem:[%s363 + $0xf0] sm:$0xff] %v1468
          %1501 = vst [vmem:[%s363 + $0xf8] sm:$0xff] %v1469
        $region48: #{_gcn_forward.3} parent=35 // pred_fallthru
          _
        // Predicated region
        $region49: #{_gcn_forward.3} parent=35 // pred_check
          %p1502 = pneg %p365
        $region50: #{_gcn_forward.3} parent=35 // pred_check_branch
          %1504 = sbr.rel (%p1502) target = $region52
        $region51: #{_gcn_forward.3} parent=35 // pred_region
          %v1505 = vld [vmem:[%s363] sm:$0xff]
          %v1506 = vld [vmem:[%s363 + $0x8] sm:$0xff]
          %v1507 = vld [vmem:[%s363 + $0x10] sm:$0xff]
          %v1508 = vld [vmem:[%s363 + $0x18] sm:$0xff]
          %v1509 = vld [vmem:[%s363 + $0x20] sm:$0xff]
          %v1510 = vld [vmem:[%s363 + $0x28] sm:$0xff]
          %v1511 = vld [vmem:[%s363 + $0x30] sm:$0xff]
          %v1512 = vld [vmem:[%s363 + $0x38] sm:$0xff]
          %v1513 = vld [vmem:[%s363 + $0x40] sm:$0xff]
          %v1514 = vld [vmem:[%s363 + $0x48] sm:$0xff]
          %v1515 = vld [vmem:[%s363 + $0x50] sm:$0xff]
          %v1516 = vld [vmem:[%s363 + $0x58] sm:$0xff]
          %v1517 = vld [vmem:[%s363 + $0x60] sm:$0xff]
          %v1518 = vld [vmem:[%s363 + $0x68] sm:$0xff]
          %v1519 = vld [vmem:[%s363 + $0x70] sm:$0xff]
          %v1520 = vld [vmem:[%s363 + $0x78] sm:$0xff]
          %v1521 = vld [vmem:[%s363 + $0x80] sm:$0xff]
          %v1522 = vld [vmem:[%s363 + $0x88] sm:$0xff]
          %v1523 = vld [vmem:[%s363 + $0x90] sm:$0xff]
          %v1524 = vld [vmem:[%s363 + $0x98] sm:$0xff]
          %v1525 = vld [vmem:[%s363 + $0xa0] sm:$0xff]
          %v1526 = vld [vmem:[%s363 + $0xa8] sm:$0xff]
          %v1527 = vld [vmem:[%s363 + $0xb0] sm:$0xff]
          %v1528 = vld [vmem:[%s363 + $0xb8] sm:$0xff]
          %v1529 = vld [vmem:[%s363 + $0xc0] sm:$0xff]
          %v1530 = vld [vmem:[%s363 + $0xc8] sm:$0xff]
          %v1531 = vld [vmem:[%s363 + $0xd0] sm:$0xff]
          %v1532 = vld [vmem:[%s363 + $0xd8] sm:$0xff]
          %v1533 = vld [vmem:[%s363 + $0xe0] sm:$0xff]
          %v1534 = vld [vmem:[%s363 + $0xe8] sm:$0xff]
          %v1535 = vld [vmem:[%s363 + $0xf0] sm:$0xff]
          %v1536 = vld [vmem:[%s363 + $0xf8] sm:$0xff]
          %vm1537 = vcmp.ge.f32.partialorder %v1505, 0.0
          %vm1538 = vcmp.ge.f32.partialorder %v1506, 0.0
          %vm1539 = vcmp.ge.f32.partialorder %v1507, 0.0
          %vm1540 = vcmp.ge.f32.partialorder %v1508, 0.0
          %vm1541 = vcmp.ge.f32.partialorder %v1509, 0.0
          %vm1542 = vcmp.ge.f32.partialorder %v1510, 0.0
          %vm1543 = vcmp.ge.f32.partialorder %v1511, 0.0
          %vm1544 = vcmp.ge.f32.partialorder %v1512, 0.0
          %vm1545 = vcmp.ge.f32.partialorder %v1513, 0.0
          %vm1546 = vcmp.ge.f32.partialorder %v1514, 0.0
          %vm1547 = vcmp.ge.f32.partialorder %v1515, 0.0
          %vm1548 = vcmp.ge.f32.partialorder %v1516, 0.0
          %vm1549 = vcmp.ge.f32.partialorder %v1517, 0.0
          %vm1550 = vcmp.ge.f32.partialorder %v1518, 0.0
          %vm1551 = vcmp.ge.f32.partialorder %v1519, 0.0
          %vm1552 = vcmp.ge.f32.partialorder %v1520, 0.0
          %vm1553 = vcmp.ge.f32.partialorder %v1521, 0.0
          %vm1554 = vcmp.ge.f32.partialorder %v1522, 0.0
          %vm1555 = vcmp.ge.f32.partialorder %v1523, 0.0
          %vm1556 = vcmp.ge.f32.partialorder %v1524, 0.0
          %vm1557 = vcmp.ge.f32.partialorder %v1525, 0.0
          %vm1558 = vcmp.ge.f32.partialorder %v1526, 0.0
          %vm1559 = vcmp.ge.f32.partialorder %v1527, 0.0
          %vm1560 = vcmp.ge.f32.partialorder %v1528, 0.0
          %vm1561 = vcmp.ge.f32.partialorder %v1529, 0.0
          %vm1562 = vcmp.ge.f32.partialorder %v1530, 0.0
          %vm1563 = vcmp.ge.f32.partialorder %v1531, 0.0
          %vm1564 = vcmp.ge.f32.partialorder %v1532, 0.0
          %vm1565 = vcmp.ge.f32.partialorder %v1533, 0.0
          %vm1566 = vcmp.ge.f32.partialorder %v1534, 0.0
          %vm1567 = vcmp.ge.f32.partialorder %v1535, 0.0
          %vm1568 = vcmp.ge.f32.partialorder %v1536, 0.0
          %v1569 = vld [vmem:[%s5] sm:$0x1]
          %v1571 = vperm.slane %v1569, 0
          %v1573 = vmul.f32 %v1571, %v1505
          %v1574 = vmul.f32 %v1571, %v1506
          %v1575 = vmul.f32 %v1571, %v1507
          %v1576 = vmul.f32 %v1571, %v1508
          %v1577 = vmul.f32 %v1571, %v1509
          %v1578 = vmul.f32 %v1571, %v1510
          %v1579 = vmul.f32 %v1571, %v1511
          %v1580 = vmul.f32 %v1571, %v1512
          %v1581 = vmul.f32 %v1571, %v1513
          %v1582 = vmul.f32 %v1571, %v1514
          %v1583 = vmul.f32 %v1571, %v1515
          %v1584 = vmul.f32 %v1571, %v1516
          %v1585 = vmul.f32 %v1571, %v1517
          %v1586 = vmul.f32 %v1571, %v1518
          %v1587 = vmul.f32 %v1571, %v1519
          %v1588 = vmul.f32 %v1571, %v1520
          %v1589 = vmul.f32 %v1571, %v1521
          %v1590 = vmul.f32 %v1571, %v1522
          %v1591 = vmul.f32 %v1571, %v1523
          %v1592 = vmul.f32 %v1571, %v1524
          %v1593 = vmul.f32 %v1571, %v1525
          %v1594 = vmul.f32 %v1571, %v1526
          %v1595 = vmul.f32 %v1571, %v1527
          %v1596 = vmul.f32 %v1571, %v1528
          %v1597 = vmul.f32 %v1571, %v1529
          %v1598 = vmul.f32 %v1571, %v1530
          %v1599 = vmul.f32 %v1571, %v1531
          %v1600 = vmul.f32 %v1571, %v1532
          %v1601 = vmul.f32 %v1571, %v1533
          %v1602 = vmul.f32 %v1571, %v1534
          %v1603 = vmul.f32 %v1571, %v1535
          %v1604 = vmul.f32 %v1571, %v1536
          %v1605 = vsel %vm1537, %v1505, %v1573
          %v1606 = vsel %vm1538, %v1506, %v1574
          %v1607 = vsel %vm1539, %v1507, %v1575
          %v1608 = vsel %vm1540, %v1508, %v1576
          %v1609 = vsel %vm1541, %v1509, %v1577
          %v1610 = vsel %vm1542, %v1510, %v1578
          %v1611 = vsel %vm1543, %v1511, %v1579
          %v1612 = vsel %vm1544, %v1512, %v1580
          %v1613 = vsel %vm1545, %v1513, %v1581
          %v1614 = vsel %vm1546, %v1514, %v1582
          %v1615 = vsel %vm1547, %v1515, %v1583
          %v1616 = vsel %vm1548, %v1516, %v1584
          %v1617 = vsel %vm1549, %v1517, %v1585
          %v1618 = vsel %vm1550, %v1518, %v1586
          %v1619 = vsel %vm1551, %v1519, %v1587
          %v1620 = vsel %vm1552, %v1520, %v1588
          %v1621 = vsel %vm1553, %v1521, %v1589
          %v1622 = vsel %vm1554, %v1522, %v1590
          %v1623 = vsel %vm1555, %v1523, %v1591
          %v1624 = vsel %vm1556, %v1524, %v1592
          %v1625 = vsel %vm1557, %v1525, %v1593
          %v1626 = vsel %vm1558, %v1526, %v1594
          %v1627 = vsel %vm1559, %v1527, %v1595
          %v1628 = vsel %vm1560, %v1528, %v1596
          %v1629 = vsel %vm1561, %v1529, %v1597
          %v1630 = vsel %vm1562, %v1530, %v1598
          %v1631 = vsel %vm1563, %v1531, %v1599
          %v1632 = vsel %vm1564, %v1532, %v1600
          %v1633 = vsel %vm1565, %v1533, %v1601
          %v1634 = vsel %vm1566, %v1534, %v1602
          %v1635 = vsel %vm1567, %v1535, %v1603
          %v1636 = vsel %vm1568, %v1536, %v1604
          %1637 = vst [vmem:[%s363] sm:$0xff] %v1605
          %1638 = vst [vmem:[%s363 + $0x8] sm:$0xff] %v1606
          %1639 = vst [vmem:[%s363 + $0x10] sm:$0xff] %v1607
          %1640 = vst [vmem:[%s363 + $0x18] sm:$0xff] %v1608
          %1641 = vst [vmem:[%s363 + $0x20] sm:$0xff] %v1609
          %1642 = vst [vmem:[%s363 + $0x28] sm:$0xff] %v1610
          %1643 = vst [vmem:[%s363 + $0x30] sm:$0xff] %v1611
          %1644 = vst [vmem:[%s363 + $0x38] sm:$0xff] %v1612
          %1645 = vst [vmem:[%s363 + $0x40] sm:$0xff] %v1613
          %1646 = vst [vmem:[%s363 + $0x48] sm:$0xff] %v1614
          %1647 = vst [vmem:[%s363 + $0x50] sm:$0xff] %v1615
          %1648 = vst [vmem:[%s363 + $0x58] sm:$0xff] %v1616
          %1649 = vst [vmem:[%s363 + $0x60] sm:$0xff] %v1617
          %1650 = vst [vmem:[%s363 + $0x68] sm:$0xff] %v1618
          %1651 = vst [vmem:[%s363 + $0x70] sm:$0xff] %v1619
          %1652 = vst [vmem:[%s363 + $0x78] sm:$0xff] %v1620
          %1653 = vst [vmem:[%s363 + $0x80] sm:$0xff] %v1621
          %1654 = vst [vmem:[%s363 + $0x88] sm:$0xff] %v1622
          %1655 = vst [vmem:[%s363 + $0x90] sm:$0xff] %v1623
          %1656 = vst [vmem:[%s363 + $0x98] sm:$0xff] %v1624
          %1657 = vst [vmem:[%s363 + $0xa0] sm:$0xff] %v1625
          %1658 = vst [vmem:[%s363 + $0xa8] sm:$0xff] %v1626
          %1659 = vst [vmem:[%s363 + $0xb0] sm:$0xff] %v1627
          %1660 = vst [vmem:[%s363 + $0xb8] sm:$0xff] %v1628
          %1661 = vst [vmem:[%s363 + $0xc0] sm:$0xff] %v1629
          %1662 = vst [vmem:[%s363 + $0xc8] sm:$0xff] %v1630
          %1663 = vst [vmem:[%s363 + $0xd0] sm:$0xff] %v1631
          %1664 = vst [vmem:[%s363 + $0xd8] sm:$0xff] %v1632
          %1665 = vst [vmem:[%s363 + $0xe0] sm:$0xff] %v1633
          %1666 = vst [vmem:[%s363 + $0xe8] sm:$0xff] %v1634
          %1667 = vst [vmem:[%s363 + $0xf0] sm:$0xff] %v1635
          %1668 = vst [vmem:[%s363 + $0xf8] sm:$0xff] %v1636
        $region52: #{_gcn_forward.3} parent=35 // pred_fallthru
          _
        %s1669 = smul.u32 32, %s37
        %p1670 = scmp.lt.s32.totalorder %s1669, 63
        %s1671 = scalar_select %p1670, %s1669, 63
        %s1672 = smul.addr %s1671, 8
        %s1673 = scalar_lea.vmem %s6, %s1672
        // Predicated region
        $region53: #{_gcn_forward.3} parent=35 // pred_check
          %p1674 = pneg %p191
        $region54: #{_gcn_forward.3} parent=35 // pred_check_branch
          %1676 = sbr.rel (%p1674) target = $region56
        $region55: #{_gcn_forward.3} parent=35 // pred_region
          %s1677 = smul.u32 32, %s37
        $region56: #{_gcn_forward.3} parent=35 // pred_fallthru
          _
      $region36: #{_gcn_forward.3} parent=5 // pred_fallthru
        _
      %p1678 = scmp.le.s32.totalorder 2, %s28
      // Predicated region
      $region57: #{_gcn_forward.3} parent=5 // pred_check
        %p1679 = pneg %p1678
      $region58: #{_gcn_forward.3} parent=5 // pred_check_branch
        %1681 = sbr.rel (%p1679) target = $region60
      $region59: #{_gcn_forward.3} parent=5 // pred_region
        %s1682 = ssub.s32 %s28, 2
        // Predicated region
        $region61: #{_gcn_forward.3} parent=59 // pred_check
          %p1683 = pneg %p197
        $region62: #{_gcn_forward.3} parent=59 // pred_check_branch
          %1685 = sbr.rel (%p1683) target = $region64
        $region63: #{_gcn_forward.3} parent=59 // pred_region
          %s1686 = smul.u32 32, %s39
          %p1687 = scmp.lt.s32.totalorder %s1686, 63
          %s1688 = scalar_select %p1687, %s1686, 63
          %s1689 = smul.addr %s1688, 8
          %s1690 = scalar_lea.vmem %s6, %s1689
        $region64: #{_gcn_forward.3} parent=59 // pred_fallthru
          _
      $region60: #{_gcn_forward.3} parent=5 // pred_fallthru
        _
    $region6: #{_gcn_forward.3} parent=1 // loop_footer
      %s32 = sadd.s32 1, %s28
    $region7: #{_gcn_forward.3} parent=1 // loop_footer_branch
      %27 = sbr.rel target = $region3
    $region8: #{_gcn_forward.3} parent=1 // loop_exit
      _
    %1691 = vsyncpa [#allocation6], 1
    %s1692 = scalar_lea.sflag [#allocation6], 1
    %1693 = vsyncpa %s1692, 1

</llo_original>
